<compile_context>
chip_gen: v6e
topology: v6e:2x2x1
jax: 0.10.0
libtpu: 0.0.40
codegen_flags: <defaults>
</compile_context>

<pallas_src>
import functools

import numpy as np

import jax
import jax.numpy as jnp
from jax.experimental import pallas as pl
from jax.experimental.pallas import tpu as pltpu


def _round_up(x, m):
    return ((x + m - 1) // m) * m


def _knn_sample_kernel(trg_ref, cx_row_ref, cy_row_ref, cx_col_ref, cy_col_ref,
                       cxs_ref, cys_ref, vis_ref, out_ref, *, n_nearest):
    N = cx_row_ref.shape[1]
    V = vis_ref.shape[0]
    S = out_ref.shape[1]                      # padded selection width (128k)

    b = pl.program_id(0)
    trg = trg_ref[b]                          # target location id (SMEM scalar)
    qx = cxs_ref[trg]                         # query coords gathered on the
    qy = cys_ref[trg]                         # scalar path (SMEM, dynamic idx)

    # Squared Euclidean distance to every location, in lane layout (1,N) and
    # sublane layout (N,1).  Both use the exact same op order so values are
    # bitwise identical per location (the equality tie-break relies on this).
    dxr = cx_row_ref[...] - qx
    dyr = cy_row_ref[...] - qy
    dist_row = dxr * dxr + dyr * dyr          # (1, N)
    dxc = cx_col_ref[...] - qx
    dyc = cy_col_ref[...] - qy
    dist_col = dxc * dxc + dyc * dyc          # (N, 1)

    # A[i, j] = 1 iff location j sorts strictly before location i (distance,
    # ties broken by lower index == stable argsort).  The index tie-break is a
    # (1,N) vs (N,1) broadcast compare; no (N,N) iota is materialized.
    j_row = jax.lax.broadcasted_iota(jnp.int32, (1, N), 1)
    i_col = jax.lax.broadcasted_iota(jnp.int32, (N, 1), 0)
    A = (dist_row < dist_col) | ((dist_row == dist_col) & (j_row < i_col))
    A_bf = A.astype(jnp.bfloat16)             # (N, N) MXU operand

    # Visited membership, column layout only: V is tiny, so unrolled scalar
    # compares against the sublane iota (no (N,V) materialization).
    vis_mask = jnp.zeros((N, 1), jnp.bool_)
    for v in range(V):
        vis_mask = vis_mask | (i_col == vis_ref[v])
    not_vis_col = jnp.logical_not(vis_mask)   # (N, 1)

    # Counting on the MXU.  RHS lanes are the (padded) selection slots, so the
    # counts land directly in a lane-dense (N, S) layout:
    #   rank[i] = #{j : j sorts before i}
    #   sel[i]  = #{j : j sorts before i and j is unvisited}
    # Counts <= N accumulated in f32 are exact.
    ones_rhs = jnp.ones((N, S), jnp.bfloat16)
    nvis_rhs = jnp.broadcast_to(not_vis_col.astype(jnp.bfloat16), (N, S))
    rank = jnp.dot(A_bf, ones_rhs, preferred_element_type=jnp.float32)  # (N,S)
    sel = jnp.dot(A_bf, nvis_rhs, preferred_element_type=jnp.float32)   # (N,S)

    # Location i is emitted at slot s iff it is among the n_nearest nearest,
    # unvisited, and exactly s unvisited locations are nearer.  (For such i,
    # every nearer location is automatically inside the n_nearest set, so this
    # matches walking the sorted neighbour list and skipping visited ones.)
    elig = (rank < float(n_nearest)) & not_vis_col                       # (N,S)
    s_iota = jax.lax.broadcasted_iota(jnp.int32, (1, S), 1).astype(jnp.float32)
    onehot = elig & (sel == s_iota)                                      # (N,S)
    loc_col = jax.lax.broadcasted_iota(jnp.int32, (N, 1), 0).astype(jnp.float32)
    picked = jnp.where(onehot, loc_col, -1.0)                            # (N,S)
    # At most one location matches each slot; empty slots come out as -1.
    out_ref[...] = jnp.max(picked, axis=0, keepdims=True).astype(jnp.int32)


def knn_negative_samples(coords, trg_locs, visited, *, n_nearest, num_negs):
    """Batched evaluating-branch sampler.

    coords:   (N, 2) float32 location coordinates (models loc_query_sys).
    trg_locs: (B,)  int32 target location ids.
    visited:  (V,)  int32 visited location ids (pad with -1 if needed).
    Returns   (B, num_negs) int32; slots with no eligible neighbour are -1.
    """
    coords = jnp.asarray(coords, jnp.float32)
    trg_locs = jnp.asarray(trg_locs, jnp.int32).reshape(-1)
    visited = jnp.asarray(visited, jnp.int32).reshape(-1)

    N = coords.shape[0]
    B = trg_locs.shape[0]
    S_PAD = max(128, _round_up(int(num_negs), 128))   # lane-dense output

    cx_row = coords[:, 0].reshape(1, N)
    cy_row = coords[:, 1].reshape(1, N)
    cx_col = coords[:, 0].reshape(N, 1)
    cy_col = coords[:, 1].reshape(N, 1)
    cx_s = coords[:, 0]                                # SMEM copies for the
    cy_s = coords[:, 1]                                # scalar query gather

    kernel = functools.partial(_knn_sample_kernel, n_nearest=int(n_nearest))
    smem_spec = pl.BlockSpec(memory_space=pltpu.MemorySpace.SMEM)

    out = pl.pallas_call(
        kernel,
        out_shape=jax.ShapeDtypeStruct((B, S_PAD), jnp.int32),
        grid_spec=pltpu.PrefetchScalarGridSpec(
            num_scalar_prefetch=1,                     # trg_locs -> SMEM
            grid=(B,),
            in_specs=[
                pl.BlockSpec((1, N), lambda b, trg: (0, 0)),   # cx_row
                pl.BlockSpec((1, N), lambda b, trg: (0, 0)),   # cy_row
                pl.BlockSpec((N, 1), lambda b, trg: (0, 0)),   # cx_col
                pl.BlockSpec((N, 1), lambda b, trg: (0, 0)),   # cy_col
                smem_spec,                                     # cx_s (SMEM)
                smem_spec,                                     # cy_s (SMEM)
                smem_spec,                                     # visited (SMEM)
            ],
            out_specs=pl.BlockSpec((1, S_PAD), lambda b, trg: (b, 0)),
        ),
        compiler_params=pltpu.CompilerParams(
            dimension_semantics=("parallel",)),        # shards batch on v7x
    )(trg_locs, cx_row, cy_row, cx_col, cy_col, cx_s, cy_s, visited)

    return out[:, :num_negs]


class KNNSamplerBaselinePallas:
    """JAX/Pallas port of KNNSampler_baseline (evaluating / default branches)."""

    def __init__(self, loc_coords, n_nearest, user_visited_locs, state,
                 exclude_visited=True):
        # loc_coords: (n_locs, 2) float32 -- models loc_query_sys (KNN over
        # squared-Euclidean distance; the query location itself is included).
        self.loc_coords = jnp.asarray(loc_coords, jnp.float32)
        self.n_nearest = int(n_nearest)
        self.user_visited_locs = user_visited_locs      # dict: user -> ids
        self.state = state
        self.exclude_visited = exclude_visited

    def sample_batch(self, trg_locs, num_negs, user):
        visited = jnp.asarray(self.user_visited_locs[user], jnp.int32)
        return knn_negative_samples(self.loc_coords, trg_locs, visited,
                                    n_nearest=self.n_nearest,
                                    num_negs=num_negs)

    def __call__(self, trg_seq, num_negs, user):
        if self.state == 'training':
            # TODO(synk): host-RNG rejection sampling (while sample in
            # visited) has no clean Pallas equivalent.
            raise NotImplementedError("training branch not ported to Pallas")
        trg_loc = jnp.asarray(trg_seq)[0, 1].reshape(1)   # trg_seq[0][1]
        return self.sample_batch(trg_loc, num_negs, user)  # (1, num_negs) i32


if __name__ == "__main__":
    key = jax.random.PRNGKey(0)
    k1, k2, k3 = jax.random.split(key, 3)

    n_locs = 256
    n_nearest = 16
    num_negs = 8
    seq_len = 8
    n_visited = 4

    coords = jax.random.uniform(k1, (n_locs, 2), dtype=jnp.float32)
    trg_seq = jax.random.randint(k2, (1, seq_len), 0, n_locs, dtype=jnp.int32)
    user = 0
    user_visited_locs = {
        user: jax.random.randint(k3, (n_visited,), 0, n_locs, dtype=jnp.int32)
    }

    sampler = KNNSamplerBaselinePallas(coords, n_nearest, user_visited_locs,
                                       state="evaluating",
                                       exclude_visited=True)

    # Single-query path (matches the original forward semantics).
    neg_samples = sampler(trg_seq, num_negs, user)
    neg_samples = jax.block_until_ready(neg_samples)

    # Batched path: one pallas_call for all targets in the sequence.
    batch_targets = trg_seq[0]                                  # (seq_len,)
    neg_batch = sampler.sample_batch(batch_targets, num_negs, user)
    neg_batch = jax.block_until_ready(neg_batch)

    # Pure numpy reference of the evaluating branch.
    coords_np = np.asarray(coords, np.float32)
    visited_set = {int(v) for v in np.asarray(user_visited_locs[user])}

    def ref_samples(t):
        dx = coords_np[:, 0] - coords_np[t, 0]
        dy = coords_np[:, 1] - coords_np[t, 1]
        d = dx * dx + dy * dy
        nearby = np.argsort(d, kind="stable")[:n_nearest]
        out = [int(i) for i in nearby if int(i) not in visited_set][:num_negs]
        return out + [-1] * (num_negs - len(out))

    trg0 = int(trg_seq[0, 1])
    assert neg_samples.shape == (1, num_negs), neg_samples.shape
    assert neg_samples.dtype == jnp.int32
    assert [int(x) for x in neg_samples[0]] == ref_samples(trg0), \
        (neg_samples, ref_samples(trg0))

    assert neg_batch.shape == (seq_len, num_negs), neg_batch.shape
    for bi in range(seq_len):
        t = int(batch_targets[bi])
        assert [int(x) for x in neg_batch[bi]] == ref_samples(t), \
            (bi, neg_batch[bi], ref_samples(t))

    print("KERNEL_OK")
</pallas_src>

<mosaic_0001>
module attributes {stable_mosaic.version = 11 : i64} {
  func.func @_knn_sample_kernel(%arg0: i32, %arg1: memref<1xi32, #tpu.memory_space<smem>>, %arg2: memref<1x256xf32, #tpu.memory_space<vmem>>, %arg3: memref<1x256xf32, #tpu.memory_space<vmem>>, %arg4: memref<256x1xf32, #tpu.memory_space<vmem>>, %arg5: memref<256x1xf32, #tpu.memory_space<vmem>>, %arg6: memref<256xf32, #tpu.memory_space<smem>>, %arg7: memref<256xf32, #tpu.memory_space<smem>>, %arg8: memref<4xi32, #tpu.memory_space<smem>>, %arg9: memref<1x128xi32, #tpu.memory_space<vmem>>) attributes {dimension_semantics = [#tpu.dimension_semantics<parallel>], iteration_bounds = array<i64: 1>, scalar_prefetch = 1 : i64, scratch_operands = 0 : i64, tpu.core_type = #tpu.core_type<tc>, window_params = [{pipeline_mode = #tpu.pipeline_mode<synchronous>, transform_indices = @transform_0, window_bounds = array<i64: 1, 256>}, {pipeline_mode = #tpu.pipeline_mode<synchronous>, transform_indices = @transform_1, window_bounds = array<i64: 1, 256>}, {pipeline_mode = #tpu.pipeline_mode<synchronous>, transform_indices = @transform_2, window_bounds = array<i64: 256, 1>}, {pipeline_mode = #tpu.pipeline_mode<synchronous>, transform_indices = @transform_3, window_bounds = array<i64: 256, 1>}, {transform_indices = @transform_4, window_bounds = array<i64: 256>}, {transform_indices = @transform_5, window_bounds = array<i64: 256>}, {transform_indices = @transform_6, window_bounds = array<i64: 4>}, {transform_indices = @transform_7, window_bounds = array<i64: 1, 128>}]} {
    %0 = arith.index_cast %arg0 : i32 to index
    %1 = memref.load %arg1[%0] : memref<1xi32, #tpu.memory_space<smem>>
    %2 = arith.index_cast %1 : i32 to index
    %3 = memref.load %arg6[%2] : memref<256xf32, #tpu.memory_space<smem>>
    %4 = arith.index_cast %1 : i32 to index
    %5 = memref.load %arg7[%4] : memref<256xf32, #tpu.memory_space<smem>>
    %c0 = arith.constant 0 : index
    %c0_0 = arith.constant 0 : index
    %6 = vector.load %arg2[%c0, %c0_0] : memref<1x256xf32, #tpu.memory_space<vmem>>, vector<1x256xf32>
    %7 = vector.broadcast %3 : f32 to vector<1x256xf32>
    %8 = arith.subf %6, %7 : vector<1x256xf32>
    %c0_1 = arith.constant 0 : index
    %c0_2 = arith.constant 0 : index
    %9 = vector.load %arg3[%c0_1, %c0_2] : memref<1x256xf32, #tpu.memory_space<vmem>>, vector<1x256xf32>
    %10 = vector.broadcast %5 : f32 to vector<1x256xf32>
    %11 = arith.subf %9, %10 : vector<1x256xf32>
    %12 = arith.mulf %8, %8 : vector<1x256xf32>
    %13 = arith.mulf %11, %11 : vector<1x256xf32>
    %14 = arith.addf %12, %13 : vector<1x256xf32>
    %c0_3 = arith.constant 0 : index
    %c0_4 = arith.constant 0 : index
    %15 = vector.load %arg4[%c0_3, %c0_4] : memref<256x1xf32, #tpu.memory_space<vmem>>, vector<256x1xf32>
    %16 = vector.broadcast %3 : f32 to vector<256x1xf32>
    %17 = arith.subf %15, %16 : vector<256x1xf32>
    %c0_5 = arith.constant 0 : index
    %c0_6 = arith.constant 0 : index
    %18 = vector.load %arg5[%c0_5, %c0_6] : memref<256x1xf32, #tpu.memory_space<vmem>>, vector<256x1xf32>
    %19 = vector.broadcast %5 : f32 to vector<256x1xf32>
    %20 = arith.subf %18, %19 : vector<256x1xf32>
    %21 = arith.mulf %17, %17 : vector<256x1xf32>
    %22 = arith.mulf %20, %20 : vector<256x1xf32>
    %23 = arith.addf %21, %22 : vector<256x1xf32>
    %24 = tpu.iota {dimensions = array<i32: 1>} : vector<1x256xi32>
    %25 = tpu.iota {dimensions = array<i32: 0>} : vector<256x1xi32>
    %26 = vector.broadcast %14 : vector<1x256xf32> to vector<256x256xf32>
    %27 = vector.broadcast %23 : vector<256x1xf32> to vector<256x256xf32>
    %28 = arith.cmpf olt, %26, %27 : vector<256x256xf32>
    %29 = vector.broadcast %14 : vector<1x256xf32> to vector<256x256xf32>
    %30 = vector.broadcast %23 : vector<256x1xf32> to vector<256x256xf32>
    %31 = arith.cmpf oeq, %29, %30 : vector<256x256xf32>
    %32 = vector.broadcast %24 : vector<1x256xi32> to vector<256x256xi32>
    %33 = vector.broadcast %25 : vector<256x1xi32> to vector<256x256xi32>
    %34 = arith.cmpi slt, %32, %33 : vector<256x256xi32>
    %35 = arith.andi %31, %34 : vector<256x256xi1>
    %36 = arith.ori %28, %35 : vector<256x256xi1>
    %37 = arith.extui %36 : vector<256x256xi1> to vector<256x256xi32>
    %38 = arith.sitofp %37 : vector<256x256xi32> to vector<256x256xf32>
    %39 = arith.truncf %38 : vector<256x256xf32> to vector<256x256xbf16>
    %false = arith.constant false
    %40 = vector.broadcast %false : i1 to vector<256x1xi1>
    %c0_7 = arith.constant 0 : index
    %41 = memref.load %arg8[%c0_7] : memref<4xi32, #tpu.memory_space<smem>>
    %42 = vector.broadcast %41 : i32 to vector<256x1xi32>
    %43 = arith.cmpi eq, %25, %42 : vector<256x1xi32>
    %44 = arith.ori %40, %43 : vector<256x1xi1>
    %c1 = arith.constant 1 : index
    %45 = memref.load %arg8[%c1] : memref<4xi32, #tpu.memory_space<smem>>
    %46 = vector.broadcast %45 : i32 to vector<256x1xi32>
    %47 = arith.cmpi eq, %25, %46 : vector<256x1xi32>
    %48 = arith.ori %44, %47 : vector<256x1xi1>
    %c2 = arith.constant 2 : index
    %49 = memref.load %arg8[%c2] : memref<4xi32, #tpu.memory_space<smem>>
    %50 = vector.broadcast %49 : i32 to vector<256x1xi32>
    %51 = arith.cmpi eq, %25, %50 : vector<256x1xi32>
    %52 = arith.ori %48, %51 : vector<256x1xi1>
    %c3 = arith.constant 3 : index
    %53 = memref.load %arg8[%c3] : memref<4xi32, #tpu.memory_space<smem>>
    %54 = vector.broadcast %53 : i32 to vector<256x1xi32>
    %55 = arith.cmpi eq, %25, %54 : vector<256x1xi32>
    %56 = arith.ori %52, %55 : vector<256x1xi1>
    %cst = arith.constant dense<true> : vector<256x1xi1>
    %57 = arith.xori %56, %cst : vector<256x1xi1>
    %cst_8 = arith.constant 1.000000e+00 : bf16
    %58 = vector.broadcast %cst_8 : bf16 to vector<256x128xbf16>
    %59 = arith.extui %57 : vector<256x1xi1> to vector<256x1xi32>
    %60 = arith.sitofp %59 : vector<256x1xi32> to vector<256x1xf32>
    %61 = arith.truncf %60 : vector<256x1xf32> to vector<256x1xbf16>
    %62 = vector.shape_cast %61 : vector<256x1xbf16> to vector<256x1xbf16>
    %63 = vector.broadcast %62 : vector<256x1xbf16> to vector<256x128xbf16>
    %cst_9 = arith.constant dense<0.000000e+00> : vector<256x128xf32>
    %64 = tpu.matmul %39, %58, %cst_9 {dimension_numbers = #tpu.dot_dimension_numbers<[1], [0], [0], [1], [0, 0, 1, 1], [], []>} : vector<256x256xbf16>, vector<256x128xbf16>, vector<256x128xf32> -> vector<256x128xf32>
    %cst_10 = arith.constant dense<0.000000e+00> : vector<256x128xf32>
    %65 = tpu.matmul %39, %63, %cst_10 {dimension_numbers = #tpu.dot_dimension_numbers<[1], [0], [0], [1], [0, 0, 1, 1], [], []>} : vector<256x256xbf16>, vector<256x128xbf16>, vector<256x128xf32> -> vector<256x128xf32>
    %cst_11 = arith.constant 1.600000e+01 : f32
    %66 = vector.broadcast %cst_11 : f32 to vector<256x128xf32>
    %67 = arith.cmpf olt, %64, %66 : vector<256x128xf32>
    %68 = vector.broadcast %57 : vector<256x1xi1> to vector<256x128xi1>
    %69 = arith.andi %67, %68 : vector<256x128xi1>
    %70 = tpu.iota {dimensions = array<i32: 1>} : vector<1x128xi32>
    %71 = arith.sitofp %70 : vector<1x128xi32> to vector<1x128xf32>
    %72 = vector.broadcast %71 : vector<1x128xf32> to vector<256x128xf32>
    %73 = arith.cmpf oeq, %65, %72 : vector<256x128xf32>
    %74 = arith.andi %69, %73 : vector<256x128xi1>
    %75 = tpu.iota {dimensions = array<i32: 0>} : vector<256x1xi32>
    %76 = arith.sitofp %75 : vector<256x1xi32> to vector<256x1xf32>
    %cst_12 = arith.constant -1.000000e+00 : f32
    %77 = vector.shape_cast %76 : vector<256x1xf32> to vector<256x1xf32>
    %78 = vector.broadcast %77 : vector<256x1xf32> to vector<256x128xf32>
    %79 = vector.broadcast %cst_12 : f32 to vector<256x128xf32>
    %80 = arith.select %74, %78, %79 : vector<256x128xi1>, vector<256x128xf32>
    %cst_13 = arith.constant dense<0xFF800000> : vector<128xf32>
    %81 = vector.multi_reduction <maximumf>, %80, %cst_13 [0] : vector<256x128xf32> to vector<128xf32>
    %82 = vector.shape_cast %81 : vector<128xf32> to vector<1x128xf32>
    %83 = arith.fptosi %82 : vector<1x128xf32> to vector<1x128xi32>
    %c0_14 = arith.constant 0 : index
    %c0_15 = arith.constant 0 : index
    %84 = vector.load %arg9[%c0_14, %c0_15] : memref<1x128xi32, #tpu.memory_space<vmem>>, vector<1x128xi32>
    tpu.vector_store %arg9[%c0_14, %c0_15], %83 {strides = array<i32>} : memref<1x128xi32, #tpu.memory_space<vmem>>, vector<1x128xi32>,
    return
  }
  func.func @transform_0(%arg0: i32, %arg1: memref<1xi32, #tpu.memory_space<smem>>) -> (i32, i32) {
    %c0_i32 = arith.constant 0 : i32
    %c0_i32_0 = arith.constant 0 : i32
    %c0_i32_1 = arith.constant 0 : i32
    return %c0_i32, %c0_i32_0 : i32, i32
  }
  func.func @transform_1(%arg0: i32, %arg1: memref<1xi32, #tpu.memory_space<smem>>) -> (i32, i32) {
    %c0_i32 = arith.constant 0 : i32
    %c0_i32_0 = arith.constant 0 : i32
    %c0_i32_1 = arith.constant 0 : i32
    return %c0_i32, %c0_i32_0 : i32, i32
  }
  func.func @transform_2(%arg0: i32, %arg1: memref<1xi32, #tpu.memory_space<smem>>) -> (i32, i32) {
    %c0_i32 = arith.constant 0 : i32
    %c0_i32_0 = arith.constant 0 : i32
    %c0_i32_1 = arith.constant 0 : i32
    return %c0_i32, %c0_i32_0 : i32, i32
  }
  func.func @transform_3(%arg0: i32, %arg1: memref<1xi32, #tpu.memory_space<smem>>) -> (i32, i32) {
    %c0_i32 = arith.constant 0 : i32
    %c0_i32_0 = arith.constant 0 : i32
    %c0_i32_1 = arith.constant 0 : i32
    return %c0_i32, %c0_i32_0 : i32, i32
  }
  func.func @transform_4(%arg0: i32, %arg1: memref<1xi32, #tpu.memory_space<smem>>) -> i32 {
    %c0_i32 = arith.constant 0 : i32
    %c0_i32_0 = arith.constant 0 : i32
    return %c0_i32 : i32
  }
  func.func @transform_5(%arg0: i32, %arg1: memref<1xi32, #tpu.memory_space<smem>>) -> i32 {
    %c0_i32 = arith.constant 0 : i32
    %c0_i32_0 = arith.constant 0 : i32
    return %c0_i32 : i32
  }
  func.func @transform_6(%arg0: i32, %arg1: memref<1xi32, #tpu.memory_space<smem>>) -> i32 {
    %c0_i32 = arith.constant 0 : i32
    %c0_i32_0 = arith.constant 0 : i32
    return %c0_i32 : i32
  }
  func.func @transform_7(%arg0: i32, %arg1: memref<1xi32, #tpu.memory_space<smem>>) -> (i32, i32) {
    %c0_i32 = arith.constant 0 : i32
    %c0_i32_0 = arith.constant 0 : i32
    return %arg0, %c0_i32 : i32, i32
  }
}

</mosaic_0001>

<llo_original>
// kernel: tpu_custom_call.1
$region0: #{tpu_custom_call.1}
  #allocation0 [shape = 'u32[]', space=smem, size = 0x4, offset = 0x4, fixed_abs, tag = 'smem constant byte address 0x4 - core index']
  #allocation1 [shape = 'u32[144,128]{1,0:T(1,128)}', space=vmem, size = 0x12000, scoped, tag = 'internal scratch']
  #allocation2 [shape = 's32[1]{0}', space=sflag, size = 0x4, scoped, tag = 'scoped memory for tpu_custom_call.1']
  #allocation3 [shape = 's32[1]{0:T(128)S(6)}', space=smem, size = 0x200, scoped, tag = 'prefetched SMEM operand 0']
  %s0 = inlined_call_operand.<no memory space> [shape: s32[1], index: 0, kind: input, shape index: {}]
  %s1 = inlined_call_operand.vmem [shape: f32[1,256], index: 1, kind: input, shape index: {}]
  %s2 = inlined_call_operand.vmem [shape: f32[1,256], index: 2, kind: input, shape index: {}]
  %s3 = inlined_call_operand.vmem [shape: f32[256,1], index: 3, kind: input, shape index: {}]
  %s4 = inlined_call_operand.vmem [shape: f32[256,1], index: 4, kind: input, shape index: {}]
  %s5 = inlined_call_operand.vmem [shape: f32[256], index: 5, kind: input, shape index: {}]
  %s6 = inlined_call_operand.vmem [shape: f32[256], index: 6, kind: input, shape index: {}]
  %s7 = inlined_call_operand.vmem [shape: s32[4], index: 7, kind: input, shape index: {}]
  %s8 = inlined_call_operand.hbm [shape: s32[1,128], index: 8, kind: output, shape index: {}]
  %s9 = sld [smem:[#allocation0]]
  $region50: #{tpu_custom_call.1} parent=0
    _
  %s11 = ssub.s32 1, %s9
  %s12 = scalar_select 0, %s11, %s9
  %13 = sst [smem:[#allocation3]] %s0
  $region1: #{tpu_custom_call.1} parent=0
    #allocation4 [shape = 'u8[1024]{0}', space=smem, size = 0x400, scoped, tag = 'input window, operand 5, single buffered']
    #allocation5 [shape = 's32[1]{0}', space=sflag, size = 0x4, scoped, tag = 'scoped memory for tpu_custom_call.1']
    #allocation6 [shape = 's32[1]{0}', space=sflag, size = 0x4, scoped, tag = 'scoped memory for tpu_custom_call.1']
    #allocation7 [shape = 'u8[1024]{0}', space=smem, size = 0x400, scoped, tag = 'input window, operand 6, single buffered']
    #allocation8 [shape = 's32[1]{0}', space=sflag, size = 0x4, scoped, tag = 'scoped memory for tpu_custom_call.1']
    #allocation9 [shape = 'u8[512]{0}', space=smem, size = 0x200, scoped, tag = 'input window, operand 7, single buffered']
    #allocation10 [shape = 'u8[512]{0}', space=vmem, size = 0x400, scoped, tag = 'output window, operand 0, single buffered']
    %14 = vsyncpa [#allocation6], 0
    %15 = vsyncpa [#allocation8], 0
    %16 = vsyncpa [#allocation5], 0
    // Predicated region
    $region2: #{tpu_custom_call.1} parent=1 // pred_check
      _
    $region3: #{tpu_custom_call.1} parent=1 // pred_check_branch
      %18 = sbr.rel (0) target = $region5
    $region4: #{tpu_custom_call.1} parent=1 // pred_region
      _
    $region5: #{tpu_custom_call.1} parent=1 // pred_fallthru
      _
    // Predicated region
    $region6: #{tpu_custom_call.1} parent=1 // pred_check
      _
    $region7: #{tpu_custom_call.1} parent=1 // pred_check_branch
      %20 = sbr.rel (0) target = $region9
    $region8: #{tpu_custom_call.1} parent=1 // pred_region
      _
    $region9: #{tpu_custom_call.1} parent=1 // pred_fallthru
      _
    // Predicated region
    $region10: #{tpu_custom_call.1} parent=1 // pred_check
      _
    $region11: #{tpu_custom_call.1} parent=1 // pred_check_branch
      %22 = sbr.rel (0) target = $region13
    $region12: #{tpu_custom_call.1} parent=1 // pred_region
      _
    $region13: #{tpu_custom_call.1} parent=1 // pred_fallthru
      _
    // Predicated region
    $region14: #{tpu_custom_call.1} parent=1 // pred_check
      _
    $region15: #{tpu_custom_call.1} parent=1 // pred_check_branch
      %24 = sbr.rel (0) target = $region17
    $region16: #{tpu_custom_call.1} parent=1 // pred_region
      _
    $region17: #{tpu_custom_call.1} parent=1 // pred_fallthru
      _
    // Predicated region
    $region18: #{tpu_custom_call.1} parent=1 // pred_check
      _
    $region19: #{tpu_custom_call.1} parent=1 // pred_check_branch
      %26 = sbr.rel (0) target = $region21
    $region20: #{tpu_custom_call.1} parent=1 // pred_region
      %s28 = ssub.s32 32, 32
      %29 = vsyncadd [#allocation6], %s28
      %s31 = sshll.u32 %s5, 4
      %s32 = int_to_ptr.vmem [resolvable:$true] %s31
      %34 = dma.vmem_to_smem %s32, 32, [#allocation4], [#allocation6]
    $region21: #{tpu_custom_call.1} parent=1 // pred_fallthru
      _
    // Predicated region
    $region22: #{tpu_custom_call.1} parent=1 // pred_check
      _
    $region23: #{tpu_custom_call.1} parent=1 // pred_check_branch
      %36 = sbr.rel (0) target = $region25
    $region24: #{tpu_custom_call.1} parent=1 // pred_region
      %s38 = ssub.s32 32, 32
      %39 = vsyncadd [#allocation8], %s38
      %s41 = sshll.u32 %s6, 4
      %s42 = int_to_ptr.vmem [resolvable:$true] %s41
      %44 = dma.vmem_to_smem %s42, 32, [#allocation7], [#allocation8]
    $region25: #{tpu_custom_call.1} parent=1 // pred_fallthru
      _
    // Predicated region
    $region26: #{tpu_custom_call.1} parent=1 // pred_check
      _
    $region27: #{tpu_custom_call.1} parent=1 // pred_check_branch
      %46 = sbr.rel (0) target = $region29
    $region28: #{tpu_custom_call.1} parent=1 // pred_region
      %s48 = ssub.s32 16, 16
      %49 = vsyncadd [#allocation8], %s48
      %s51 = sshll.u32 %s7, 4
      %s52 = int_to_ptr.vmem [resolvable:$true] %s51
      %54 = dma.vmem_to_smem %s52, 16, [#allocation9], [#allocation8]
    $region29: #{tpu_custom_call.1} parent=1 // pred_fallthru
      _
    // Predicated region
    $region30: #{tpu_custom_call.1} parent=1 // pred_check
      _
    $region31: #{tpu_custom_call.1} parent=1 // pred_check_branch
      %56 = sbr.rel (0) target = $region33
    $region32: #{tpu_custom_call.1} parent=1 // pred_region
      %57 = dma.done [#allocation6], 32
    $region33: #{tpu_custom_call.1} parent=1 // pred_fallthru
      _
    // Predicated region
    $region34: #{tpu_custom_call.1} parent=1 // pred_check
      _
    $region35: #{tpu_custom_call.1} parent=1 // pred_check_branch
      %59 = sbr.rel (0) target = $region37
    $region36: #{tpu_custom_call.1} parent=1 // pred_region
      %60 = dma.done [#allocation8], 32
    $region37: #{tpu_custom_call.1} parent=1 // pred_fallthru
      _
    // Predicated region
    $region38: #{tpu_custom_call.1} parent=1 // pred_check
      _
    $region39: #{tpu_custom_call.1} parent=1 // pred_check_branch
      %62 = sbr.rel (0) target = $region41
    $region40: #{tpu_custom_call.1} parent=1 // pred_region
      %63 = dma.done [#allocation8], 16
    $region41: #{tpu_custom_call.1} parent=1 // pred_fallthru
      _
    %64 = sfence
    %s67 = sld [smem:[#allocation3]]
    %s68 = sld [smem:[#allocation4 + %s67]]
    %s69 = sld [smem:[#allocation7 + %s67]]
    %v70 = vld [vmem:[%s1] sm:$0x3]
    %v71 = vstv %s68
    %v72 = vsub.f32 %v70, %v71
    %v73 = vld [vmem:[%s2] sm:$0x3]
    %v74 = vstv %s69
    %v75 = vsub.f32 %v73, %v74
    %v76 = vmul.f32 %v72, %v72
    %v77 = vmul.f32 %v75, %v75
    %v78 = vadd.f32 %v76, %v77
    %v79 = vld [vmem:[%s3] sm:$0xff]
    %v80 = vld [vmem:[%s3 + $0x8] sm:$0xff]
    %v81 = vld [vmem:[%s3 + $0x10] sm:$0xff]
    %v82 = vld [vmem:[%s3 + $0x18] sm:$0xff]
    %v83 = vld [vmem:[%s3 + $0x20] sm:$0xff]
    %v84 = vld [vmem:[%s3 + $0x28] sm:$0xff]
    %v85 = vld [vmem:[%s3 + $0x30] sm:$0xff]
    %v86 = vld [vmem:[%s3 + $0x38] sm:$0xff]
    %v87 = vld [vmem:[%s3 + $0x40] sm:$0xff]
    %v88 = vld [vmem:[%s3 + $0x48] sm:$0xff]
    %v89 = vld [vmem:[%s3 + $0x50] sm:$0xff]
    %v90 = vld [vmem:[%s3 + $0x58] sm:$0xff]
    %v91 = vld [vmem:[%s3 + $0x60] sm:$0xff]
    %v92 = vld [vmem:[%s3 + $0x68] sm:$0xff]
    %v93 = vld [vmem:[%s3 + $0x70] sm:$0xff]
    %v94 = vld [vmem:[%s3 + $0x78] sm:$0xff]
    %v95 = vld [vmem:[%s3 + $0x80] sm:$0xff]
    %v96 = vld [vmem:[%s3 + $0x88] sm:$0xff]
    %v97 = vld [vmem:[%s3 + $0x90] sm:$0xff]
    %v98 = vld [vmem:[%s3 + $0x98] sm:$0xff]
    %v99 = vld [vmem:[%s3 + $0xa0] sm:$0xff]
    %v100 = vld [vmem:[%s3 + $0xa8] sm:$0xff]
    %v101 = vld [vmem:[%s3 + $0xb0] sm:$0xff]
    %v102 = vld [vmem:[%s3 + $0xb8] sm:$0xff]
    %v103 = vld [vmem:[%s3 + $0xc0] sm:$0xff]
    %v104 = vld [vmem:[%s3 + $0xc8] sm:$0xff]
    %v105 = vld [vmem:[%s3 + $0xd0] sm:$0xff]
    %v106 = vld [vmem:[%s3 + $0xd8] sm:$0xff]
    %v107 = vld [vmem:[%s3 + $0xe0] sm:$0xff]
    %v108 = vld [vmem:[%s3 + $0xe8] sm:$0xff]
    %v109 = vld [vmem:[%s3 + $0xf0] sm:$0xff]
    %v110 = vld [vmem:[%s3 + $0xf8] sm:$0xff]
    %v111 = vsub.f32 %v79, %v71
    %v112 = vsub.f32 %v80, %v71
    %v113 = vsub.f32 %v81, %v71
    %v114 = vsub.f32 %v82, %v71
    %v115 = vsub.f32 %v83, %v71
    %v116 = vsub.f32 %v84, %v71
    %v117 = vsub.f32 %v85, %v71
    %v118 = vsub.f32 %v86, %v71
    %v119 = vsub.f32 %v87, %v71
    %v120 = vsub.f32 %v88, %v71
    %v121 = vsub.f32 %v89, %v71
    %v122 = vsub.f32 %v90, %v71
    %v123 = vsub.f32 %v91, %v71
    %v124 = vsub.f32 %v92, %v71
    %v125 = vsub.f32 %v93, %v71
    %v126 = vsub.f32 %v94, %v71
    %v127 = vsub.f32 %v95, %v71
    %v128 = vsub.f32 %v96, %v71
    %v129 = vsub.f32 %v97, %v71
    %v130 = vsub.f32 %v98, %v71
    %v131 = vsub.f32 %v99, %v71
    %v132 = vsub.f32 %v100, %v71
    %v133 = vsub.f32 %v101, %v71
    %v134 = vsub.f32 %v102, %v71
    %v135 = vsub.f32 %v103, %v71
    %v136 = vsub.f32 %v104, %v71
    %v137 = vsub.f32 %v105, %v71
    %v138 = vsub.f32 %v106, %v71
    %v139 = vsub.f32 %v107, %v71
    %v140 = vsub.f32 %v108, %v71
    %v141 = vsub.f32 %v109, %v71
    %v142 = vsub.f32 %v110, %v71
    %v143 = vld [vmem:[%s4] sm:$0xff]
    %v144 = vld [vmem:[%s4 + $0x8] sm:$0xff]
    %v145 = vld [vmem:[%s4 + $0x10] sm:$0xff]
    %v146 = vld [vmem:[%s4 + $0x18] sm:$0xff]
    %v147 = vld [vmem:[%s4 + $0x20] sm:$0xff]
    %v148 = vld [vmem:[%s4 + $0x28] sm:$0xff]
    %v149 = vld [vmem:[%s4 + $0x30] sm:$0xff]
    %v150 = vld [vmem:[%s4 + $0x38] sm:$0xff]
    %v151 = vld [vmem:[%s4 + $0x40] sm:$0xff]
    %v152 = vld [vmem:[%s4 + $0x48] sm:$0xff]
    %v153 = vld [vmem:[%s4 + $0x50] sm:$0xff]
    %v154 = vld [vmem:[%s4 + $0x58] sm:$0xff]
    %v155 = vld [vmem:[%s4 + $0x60] sm:$0xff]
    %v156 = vld [vmem:[%s4 + $0x68] sm:$0xff]
    %v157 = vld [vmem:[%s4 + $0x70] sm:$0xff]
    %v158 = vld [vmem:[%s4 + $0x78] sm:$0xff]
    %v159 = vld [vmem:[%s4 + $0x80] sm:$0xff]
    %v160 = vld [vmem:[%s4 + $0x88] sm:$0xff]
    %v161 = vld [vmem:[%s4 + $0x90] sm:$0xff]
    %v162 = vld [vmem:[%s4 + $0x98] sm:$0xff]
    %v163 = vld [vmem:[%s4 + $0xa0] sm:$0xff]
    %v164 = vld [vmem:[%s4 + $0xa8] sm:$0xff]
    %v165 = vld [vmem:[%s4 + $0xb0] sm:$0xff]
    %v166 = vld [vmem:[%s4 + $0xb8] sm:$0xff]
    %v167 = vld [vmem:[%s4 + $0xc0] sm:$0xff]
    %v168 = vld [vmem:[%s4 + $0xc8] sm:$0xff]
    %v169 = vld [vmem:[%s4 + $0xd0] sm:$0xff]
    %v170 = vld [vmem:[%s4 + $0xd8] sm:$0xff]
    %v171 = vld [vmem:[%s4 + $0xe0] sm:$0xff]
    %v172 = vld [vmem:[%s4 + $0xe8] sm:$0xff]
    %v173 = vld [vmem:[%s4 + $0xf0] sm:$0xff]
    %v174 = vld [vmem:[%s4 + $0xf8] sm:$0xff]
    %v175 = vsub.f32 %v143, %v74
    %v176 = vsub.f32 %v144, %v74
    %v177 = vsub.f32 %v145, %v74
    %v178 = vsub.f32 %v146, %v74
    %v179 = vsub.f32 %v147, %v74
    %v180 = vsub.f32 %v148, %v74
    %v181 = vsub.f32 %v149, %v74
    %v182 = vsub.f32 %v150, %v74
    %v183 = vsub.f32 %v151, %v74
    %v184 = vsub.f32 %v152, %v74
    %v185 = vsub.f32 %v153, %v74
    %v186 = vsub.f32 %v154, %v74
    %v187 = vsub.f32 %v155, %v74
    %v188 = vsub.f32 %v156, %v74
    %v189 = vsub.f32 %v157, %v74
    %v190 = vsub.f32 %v158, %v74
    %v191 = vsub.f32 %v159, %v74
    %v192 = vsub.f32 %v160, %v74
    %v193 = vsub.f32 %v161, %v74
    %v194 = vsub.f32 %v162, %v74
    %v195 = vsub.f32 %v163, %v74
    %v196 = vsub.f32 %v164, %v74
    %v197 = vsub.f32 %v165, %v74
    %v198 = vsub.f32 %v166, %v74
    %v199 = vsub.f32 %v167, %v74
    %v200 = vsub.f32 %v168, %v74
    %v201 = vsub.f32 %v169, %v74
    %v202 = vsub.f32 %v170, %v74
    %v203 = vsub.f32 %v171, %v74
    %v204 = vsub.f32 %v172, %v74
    %v205 = vsub.f32 %v173, %v74
    %v206 = vsub.f32 %v174, %v74
    %v207 = vmul.f32 %v111, %v111
    %v208 = vmul.f32 %v112, %v112
    %v209 = vmul.f32 %v113, %v113
    %v210 = vmul.f32 %v114, %v114
    %v211 = vmul.f32 %v115, %v115
    %v212 = vmul.f32 %v116, %v116
    %v213 = vmul.f32 %v117, %v117
    %v214 = vmul.f32 %v118, %v118
    %v215 = vmul.f32 %v119, %v119
    %v216 = vmul.f32 %v120, %v120
    %v217 = vmul.f32 %v121, %v121
    %v218 = vmul.f32 %v122, %v122
    %v219 = vmul.f32 %v123, %v123
    %v220 = vmul.f32 %v124, %v124
    %v221 = vmul.f32 %v125, %v125
    %v222 = vmul.f32 %v126, %v126
    %v223 = vmul.f32 %v127, %v127
    %v224 = vmul.f32 %v128, %v128
    %v225 = vmul.f32 %v129, %v129
    %v226 = vmul.f32 %v130, %v130
    %v227 = vmul.f32 %v131, %v131
    %v228 = vmul.f32 %v132, %v132
    %v229 = vmul.f32 %v133, %v133
    %v230 = vmul.f32 %v134, %v134
    %v231 = vmul.f32 %v135, %v135
    %v232 = vmul.f32 %v136, %v136
    %v233 = vmul.f32 %v137, %v137
    %v234 = vmul.f32 %v138, %v138
    %v235 = vmul.f32 %v139, %v139
    %v236 = vmul.f32 %v140, %v140
    %v237 = vmul.f32 %v141, %v141
    %v238 = vmul.f32 %v142, %v142
    %v239 = vmul.f32 %v175, %v175
    %v240 = vmul.f32 %v176, %v176
    %v241 = vmul.f32 %v177, %v177
    %v242 = vmul.f32 %v178, %v178
    %v243 = vmul.f32 %v179, %v179
    %v244 = vmul.f32 %v180, %v180
    %v245 = vmul.f32 %v181, %v181
    %v246 = vmul.f32 %v182, %v182
    %v247 = vmul.f32 %v183, %v183
    %v248 = vmul.f32 %v184, %v184
    %v249 = vmul.f32 %v185, %v185
    %v250 = vmul.f32 %v186, %v186
    %v251 = vmul.f32 %v187, %v187
    %v252 = vmul.f32 %v188, %v188
    %v253 = vmul.f32 %v189, %v189
    %v254 = vmul.f32 %v190, %v190
    %v255 = vmul.f32 %v191, %v191
    %v256 = vmul.f32 %v192, %v192
    %v257 = vmul.f32 %v193, %v193
    %v258 = vmul.f32 %v194, %v194
    %v259 = vmul.f32 %v195, %v195
    %v260 = vmul.f32 %v196, %v196
    %v261 = vmul.f32 %v197, %v197
    %v262 = vmul.f32 %v198, %v198
    %v263 = vmul.f32 %v199, %v199
    %v264 = vmul.f32 %v200, %v200
    %v265 = vmul.f32 %v201, %v201
    %v266 = vmul.f32 %v202, %v202
    %v267 = vmul.f32 %v203, %v203
    %v268 = vmul.f32 %v204, %v204
    %v269 = vmul.f32 %v205, %v205
    %v270 = vmul.f32 %v206, %v206
    %v271 = vadd.f32 %v207, %v239
    %v272 = vadd.f32 %v208, %v240
    %v273 = vadd.f32 %v209, %v241
    %v274 = vadd.f32 %v210, %v242
    %v275 = vadd.f32 %v211, %v243
    %v276 = vadd.f32 %v212, %v244
    %v277 = vadd.f32 %v213, %v245
    %v278 = vadd.f32 %v214, %v246
    %v279 = vadd.f32 %v215, %v247
    %v280 = vadd.f32 %v216, %v248
    %v281 = vadd.f32 %v217, %v249
    %v282 = vadd.f32 %v218, %v250
    %v283 = vadd.f32 %v219, %v251
    %v284 = vadd.f32 %v220, %v252
    %v285 = vadd.f32 %v221, %v253
    %v286 = vadd.f32 %v222, %v254
    %v287 = vadd.f32 %v223, %v255
    %v288 = vadd.f32 %v224, %v256
    %v289 = vadd.f32 %v225, %v257
    %v290 = vadd.f32 %v226, %v258
    %v291 = vadd.f32 %v227, %v259
    %v292 = vadd.f32 %v228, %v260
    %v293 = vadd.f32 %v229, %v261
    %v294 = vadd.f32 %v230, %v262
    %v295 = vadd.f32 %v231, %v263
    %v296 = vadd.f32 %v232, %v264
    %v297 = vadd.f32 %v233, %v265
    %v298 = vadd.f32 %v234, %v266
    %v299 = vadd.f32 %v235, %v267
    %v300 = vadd.f32 %v236, %v268
    %v301 = vadd.f32 %v237, %v269
    %v302 = vadd.f32 %v238, %v270
    %v303 = vlaneseq
    %v304 = vand.u32 %v303, 127
    %v305 = vadd.s32 %v304, 128
    %v306 = vlaneseq
    %v307 = vshrl.u32 %v306, 7
    %v308 = vadd.s32 %v307, 8
    %v309 = vadd.s32 %v307, 16
    %v310 = vadd.s32 %v307, 24
    %v311 = vadd.s32 %v307, 32
    %v312 = vadd.s32 %v307, 40
    %v313 = vadd.s32 %v307, 48
    %v314 = vadd.s32 %v307, 56
    %v315 = vadd.s32 %v307, 64
    %v316 = vadd.s32 %v307, 72
    %v317 = vadd.s32 %v307, 80
    %v318 = vadd.s32 %v307, 88
    %v319 = vadd.s32 %v307, 96
    %v320 = vadd.s32 %v307, 104
    %v321 = vadd.s32 %v307, 112
    %v322 = vadd.s32 %v307, 120
    %v323 = vadd.s32 %v307, 128
    %v324 = vadd.s32 %v307, 136
    %v325 = vadd.s32 %v307, 144
    %v326 = vadd.s32 %v307, 152
    %v327 = vadd.s32 %v307, 160
    %v328 = vadd.s32 %v307, 168
    %v329 = vadd.s32 %v307, 176
    %v330 = vadd.s32 %v307, 184
    %v331 = vadd.s32 %v307, 192
    %v332 = vadd.s32 %v307, 200
    %v333 = vadd.s32 %v307, 208
    %v334 = vadd.s32 %v307, 216
    %v335 = vadd.s32 %v307, 224
    %v336 = vadd.s32 %v307, 232
    %v337 = vadd.s32 %v307, 240
    %v338 = vadd.s32 %v307, 248
    %v340 = vlaneseq
    %v341 = vshrl.u32 %v340, 7
    %v342 = vsub.s32 0, %v341
    %v343 = vrot.slane %v78, %v342
    %v344 = vlaneseq
    %v345 = vshrl.u32 %v344, 7
    %v346 = vsub.s32 1, %v345
    %v347 = vrot.slane %v78, %v346
    %351 = vset.pattern.permute.xlu0 0
    %352 = vperm.xlu0 %351, %v271
    %v353 = vpop.permute.xlu0 %352
    %356 = vset.pattern.permute.xlu0 0
    %357 = vperm.xlu0 %356, %v272
    %v358 = vpop.permute.xlu0 %357
    %361 = vset.pattern.permute.xlu0 0
    %362 = vperm.xlu0 %361, %v273
    %v363 = vpop.permute.xlu0 %362
    %366 = vset.pattern.permute.xlu0 0
    %367 = vperm.xlu0 %366, %v274
    %v368 = vpop.permute.xlu0 %367
    %371 = vset.pattern.permute.xlu0 0
    %372 = vperm.xlu0 %371, %v275
    %v373 = vpop.permute.xlu0 %372
    %376 = vset.pattern.permute.xlu0 0
    %377 = vperm.xlu0 %376, %v276
    %v378 = vpop.permute.xlu0 %377
    %381 = vset.pattern.permute.xlu0 0
    %382 = vperm.xlu0 %381, %v277
    %v383 = vpop.permute.xlu0 %382
    %386 = vset.pattern.permute.xlu0 0
    %387 = vperm.xlu0 %386, %v278
    %v388 = vpop.permute.xlu0 %387
    %391 = vset.pattern.permute.xlu0 0
    %392 = vperm.xlu0 %391, %v279
    %v393 = vpop.permute.xlu0 %392
    %396 = vset.pattern.permute.xlu0 0
    %397 = vperm.xlu0 %396, %v280
    %v398 = vpop.permute.xlu0 %397
    %401 = vset.pattern.permute.xlu0 0
    %402 = vperm.xlu0 %401, %v281
    %v403 = vpop.permute.xlu0 %402
    %406 = vset.pattern.permute.xlu0 0
    %407 = vperm.xlu0 %406, %v282
    %v408 = vpop.permute.xlu0 %407
    %411 = vset.pattern.permute.xlu0 0
    %412 = vperm.xlu0 %411, %v283
    %v413 = vpop.permute.xlu0 %412
    %416 = vset.pattern.permute.xlu0 0
    %417 = vperm.xlu0 %416, %v284
    %v418 = vpop.permute.xlu0 %417
    %421 = vset.pattern.permute.xlu0 0
    %422 = vperm.xlu0 %421, %v285
    %v423 = vpop.permute.xlu0 %422
    %426 = vset.pattern.permute.xlu0 0
    %427 = vperm.xlu0 %426, %v286
    %v428 = vpop.permute.xlu0 %427
    %431 = vset.pattern.permute.xlu0 0
    %432 = vperm.xlu0 %431, %v287
    %v433 = vpop.permute.xlu0 %432
    %436 = vset.pattern.permute.xlu0 0
    %437 = vperm.xlu0 %436, %v288
    %v438 = vpop.permute.xlu0 %437
    %441 = vset.pattern.permute.xlu0 0
    %442 = vperm.xlu0 %441, %v289
    %v443 = vpop.permute.xlu0 %442
    %446 = vset.pattern.permute.xlu0 0
    %447 = vperm.xlu0 %446, %v290
    %v448 = vpop.permute.xlu0 %447
    %451 = vset.pattern.permute.xlu0 0
    %452 = vperm.xlu0 %451, %v291
    %v453 = vpop.permute.xlu0 %452
    %456 = vset.pattern.permute.xlu0 0
    %457 = vperm.xlu0 %456, %v292
    %v458 = vpop.permute.xlu0 %457
    %461 = vset.pattern.permute.xlu0 0
    %462 = vperm.xlu0 %461, %v293
    %v463 = vpop.permute.xlu0 %462
    %466 = vset.pattern.permute.xlu0 0
    %467 = vperm.xlu0 %466, %v294
    %v468 = vpop.permute.xlu0 %467
    %471 = vset.pattern.permute.xlu0 0
    %472 = vperm.xlu0 %471, %v295
    %v473 = vpop.permute.xlu0 %472
    %476 = vset.pattern.permute.xlu0 0
    %477 = vperm.xlu0 %476, %v296
    %v478 = vpop.permute.xlu0 %477
    %481 = vset.pattern.permute.xlu0 0
    %482 = vperm.xlu0 %481, %v297
    %v483 = vpop.permute.xlu0 %482
    %486 = vset.pattern.permute.xlu0 0
    %487 = vperm.xlu0 %486, %v298
    %v488 = vpop.permute.xlu0 %487
    %491 = vset.pattern.permute.xlu0 0
    %492 = vperm.xlu0 %491, %v299
    %v493 = vpop.permute.xlu0 %492
    %496 = vset.pattern.permute.xlu0 0
    %497 = vperm.xlu0 %496, %v300
    %v498 = vpop.permute.xlu0 %497
    %501 = vset.pattern.permute.xlu0 0
    %502 = vperm.xlu0 %501, %v301
    %v503 = vpop.permute.xlu0 %502
    %506 = vset.pattern.permute.xlu0 0
    %507 = vperm.xlu0 %506, %v302
    %v508 = vpop.permute.xlu0 %507
    %vm510 = vcmp.lt.f32.partialorder %v343, %v353
    %vm511 = vcmp.lt.f32.partialorder %v347, %v353
    %vm512 = vcmp.lt.f32.partialorder %v343, %v358
    %vm513 = vcmp.lt.f32.partialorder %v347, %v358
    %vm514 = vcmp.lt.f32.partialorder %v343, %v363
    %vm515 = vcmp.lt.f32.partialorder %v347, %v363
    %vm516 = vcmp.lt.f32.partialorder %v343, %v368
    %vm517 = vcmp.lt.f32.partialorder %v347, %v368
    %vm518 = vcmp.lt.f32.partialorder %v343, %v373
    %vm519 = vcmp.lt.f32.partialorder %v347, %v373
    %vm520 = vcmp.lt.f32.partialorder %v343, %v378
    %vm521 = vcmp.lt.f32.partialorder %v347, %v378
    %vm522 = vcmp.lt.f32.partialorder %v343, %v383
    %vm523 = vcmp.lt.f32.partialorder %v347, %v383
    %vm524 = vcmp.lt.f32.partialorder %v343, %v388
    %vm525 = vcmp.lt.f32.partialorder %v347, %v388
    %vm526 = vcmp.lt.f32.partialorder %v343, %v393
    %vm527 = vcmp.lt.f32.partialorder %v347, %v393
    %vm528 = vcmp.lt.f32.partialorder %v343, %v398
    %vm529 = vcmp.lt.f32.partialorder %v347, %v398
    %vm530 = vcmp.lt.f32.partialorder %v343, %v403
    %vm531 = vcmp.lt.f32.partialorder %v347, %v403
    %vm532 = vcmp.lt.f32.partialorder %v343, %v408
    %vm533 = vcmp.lt.f32.partialorder %v347, %v408
    %vm534 = vcmp.lt.f32.partialorder %v343, %v413
    %vm535 = vcmp.lt.f32.partialorder %v347, %v413
    %vm536 = vcmp.lt.f32.partialorder %v343, %v418
    %vm537 = vcmp.lt.f32.partialorder %v347, %v418
    %vm538 = vcmp.lt.f32.partialorder %v343, %v423
    %vm539 = vcmp.lt.f32.partialorder %v347, %v423
    %vm540 = vcmp.lt.f32.partialorder %v343, %v428
    %vm541 = vcmp.lt.f32.partialorder %v347, %v428
    %vm542 = vcmp.lt.f32.partialorder %v343, %v433
    %vm543 = vcmp.lt.f32.partialorder %v347, %v433
    %vm544 = vcmp.lt.f32.partialorder %v343, %v438
    %vm545 = vcmp.lt.f32.partialorder %v347, %v438
    %vm546 = vcmp.lt.f32.partialorder %v343, %v443
    %vm547 = vcmp.lt.f32.partialorder %v347, %v443
    %vm548 = vcmp.lt.f32.partialorder %v343, %v448
    %vm549 = vcmp.lt.f32.partialorder %v347, %v448
    %vm550 = vcmp.lt.f32.partialorder %v343, %v453
    %vm551 = vcmp.lt.f32.partialorder %v347, %v453
    %vm552 = vcmp.lt.f32.partialorder %v343, %v458
    %vm553 = vcmp.lt.f32.partialorder %v347, %v458
    %vm554 = vcmp.lt.f32.partialorder %v343, %v463
    %vm555 = vcmp.lt.f32.partialorder %v347, %v463
    %vm556 = vcmp.lt.f32.partialorder %v343, %v468
    %vm557 = vcmp.lt.f32.partialorder %v347, %v468
    %vm558 = vcmp.lt.f32.partialorder %v343, %v473
    %vm559 = vcmp.lt.f32.partialorder %v347, %v473
    %vm560 = vcmp.lt.f32.partialorder %v343, %v478
    %vm561 = vcmp.lt.f32.partialorder %v347, %v478
    %vm562 = vcmp.lt.f32.partialorder %v343, %v483
    %vm563 = vcmp.lt.f32.partialorder %v347, %v483
    %vm564 = vcmp.lt.f32.partialorder %v343, %v488
    %vm565 = vcmp.lt.f32.partialorder %v347, %v488
    %vm566 = vcmp.lt.f32.partialorder %v343, %v493
    %vm567 = vcmp.lt.f32.partialorder %v347, %v493
    %vm568 = vcmp.lt.f32.partialorder %v343, %v498
    %vm569 = vcmp.lt.f32.partialorder %v347, %v498
    %vm570 = vcmp.lt.f32.partialorder %v343, %v503
    %vm571 = vcmp.lt.f32.partialorder %v347, %v503
    %vm572 = vcmp.lt.f32.partialorder %v343, %v508
    %vm573 = vcmp.lt.f32.partialorder %v347, %v508
    %vm574 = vcmp.eq.f32.partialorder %v343, %v353
    %vm575 = vcmp.eq.f32.partialorder %v347, %v353
    %vm576 = vcmp.eq.f32.partialorder %v343, %v358
    %vm577 = vcmp.eq.f32.partialorder %v347, %v358
    %vm578 = vcmp.eq.f32.partialorder %v343, %v363
    %vm579 = vcmp.eq.f32.partialorder %v347, %v363
    %vm580 = vcmp.eq.f32.partialorder %v343, %v368
    %vm581 = vcmp.eq.f32.partialorder %v347, %v368
    %vm582 = vcmp.eq.f32.partialorder %v343, %v373
    %vm583 = vcmp.eq.f32.partialorder %v347, %v373
    %vm584 = vcmp.eq.f32.partialorder %v343, %v378
    %vm585 = vcmp.eq.f32.partialorder %v347, %v378
    %vm586 = vcmp.eq.f32.partialorder %v343, %v383
    %vm587 = vcmp.eq.f32.partialorder %v347, %v383
    %vm588 = vcmp.eq.f32.partialorder %v343, %v388
    %vm589 = vcmp.eq.f32.partialorder %v347, %v388
    %vm590 = vcmp.eq.f32.partialorder %v343, %v393
    %vm591 = vcmp.eq.f32.partialorder %v347, %v393
    %vm592 = vcmp.eq.f32.partialorder %v343, %v398
    %vm593 = vcmp.eq.f32.partialorder %v347, %v398
    %vm594 = vcmp.eq.f32.partialorder %v343, %v403
    %vm595 = vcmp.eq.f32.partialorder %v347, %v403
    %vm596 = vcmp.eq.f32.partialorder %v343, %v408
    %vm597 = vcmp.eq.f32.partialorder %v347, %v408
    %vm598 = vcmp.eq.f32.partialorder %v343, %v413
    %vm599 = vcmp.eq.f32.partialorder %v347, %v413
    %vm600 = vcmp.eq.f32.partialorder %v343, %v418
    %vm601 = vcmp.eq.f32.partialorder %v347, %v418
    %vm602 = vcmp.eq.f32.partialorder %v343, %v423
    %vm603 = vcmp.eq.f32.partialorder %v347, %v423
    %vm604 = vcmp.eq.f32.partialorder %v343, %v428
    %vm605 = vcmp.eq.f32.partialorder %v347, %v428
    %vm606 = vcmp.eq.f32.partialorder %v343, %v433
    %vm607 = vcmp.eq.f32.partialorder %v347, %v433
    %vm608 = vcmp.eq.f32.partialorder %v343, %v438
    %vm609 = vcmp.eq.f32.partialorder %v347, %v438
    %vm610 = vcmp.eq.f32.partialorder %v343, %v443
    %vm611 = vcmp.eq.f32.partialorder %v347, %v443
    %vm612 = vcmp.eq.f32.partialorder %v343, %v448
    %vm613 = vcmp.eq.f32.partialorder %v347, %v448
    %vm614 = vcmp.eq.f32.partialorder %v343, %v453
    %vm615 = vcmp.eq.f32.partialorder %v347, %v453
    %vm616 = vcmp.eq.f32.partialorder %v343, %v458
    %vm617 = vcmp.eq.f32.partialorder %v347, %v458
    %vm618 = vcmp.eq.f32.partialorder %v343, %v463
    %vm619 = vcmp.eq.f32.partialorder %v347, %v463
    %vm620 = vcmp.eq.f32.partialorder %v343, %v468
    %vm621 = vcmp.eq.f32.partialorder %v347, %v468
    %vm622 = vcmp.eq.f32.partialorder %v343, %v473
    %vm623 = vcmp.eq.f32.partialorder %v347, %v473
    %vm624 = vcmp.eq.f32.partialorder %v343, %v478
    %vm625 = vcmp.eq.f32.partialorder %v347, %v478
    %vm626 = vcmp.eq.f32.partialorder %v343, %v483
    %vm627 = vcmp.eq.f32.partialorder %v347, %v483
    %vm628 = vcmp.eq.f32.partialorder %v343, %v488
    %vm629 = vcmp.eq.f32.partialorder %v347, %v488
    %vm630 = vcmp.eq.f32.partialorder %v343, %v493
    %vm631 = vcmp.eq.f32.partialorder %v347, %v493
    %vm632 = vcmp.eq.f32.partialorder %v343, %v498
    %vm633 = vcmp.eq.f32.partialorder %v347, %v498
    %vm634 = vcmp.eq.f32.partialorder %v343, %v503
    %vm635 = vcmp.eq.f32.partialorder %v347, %v503
    %vm636 = vcmp.eq.f32.partialorder %v343, %v508
    %vm637 = vcmp.eq.f32.partialorder %v347, %v508
    %vm638 = vcmp.lt.s32.totalorder %v304, %v307
    %vm639 = vcmp.lt.s32.totalorder %v305, %v307
    %vm640 = vcmp.lt.s32.totalorder %v304, %v308
    %vm641 = vcmp.lt.s32.totalorder %v305, %v308
    %vm642 = vcmp.lt.s32.totalorder %v304, %v309
    %vm643 = vcmp.lt.s32.totalorder %v305, %v309
    %vm644 = vcmp.lt.s32.totalorder %v304, %v310
    %vm645 = vcmp.lt.s32.totalorder %v305, %v310
    %vm646 = vcmp.lt.s32.totalorder %v304, %v311
    %vm647 = vcmp.lt.s32.totalorder %v305, %v311
    %vm648 = vcmp.lt.s32.totalorder %v304, %v312
    %vm649 = vcmp.lt.s32.totalorder %v305, %v312
    %vm650 = vcmp.lt.s32.totalorder %v304, %v313
    %vm651 = vcmp.lt.s32.totalorder %v305, %v313
    %vm652 = vcmp.lt.s32.totalorder %v304, %v314
    %vm653 = vcmp.lt.s32.totalorder %v305, %v314
    %vm654 = vcmp.lt.s32.totalorder %v304, %v315
    %vm655 = vcmp.lt.s32.totalorder %v305, %v315
    %vm656 = vcmp.lt.s32.totalorder %v304, %v316
    %vm657 = vcmp.lt.s32.totalorder %v305, %v316
    %vm658 = vcmp.lt.s32.totalorder %v304, %v317
    %vm659 = vcmp.lt.s32.totalorder %v305, %v317
    %vm660 = vcmp.lt.s32.totalorder %v304, %v318
    %vm661 = vcmp.lt.s32.totalorder %v305, %v318
    %vm662 = vcmp.lt.s32.totalorder %v304, %v319
    %vm663 = vcmp.lt.s32.totalorder %v305, %v319
    %vm664 = vcmp.lt.s32.totalorder %v304, %v320
    %vm665 = vcmp.lt.s32.totalorder %v305, %v320
    %vm666 = vcmp.lt.s32.totalorder %v304, %v321
    %vm667 = vcmp.lt.s32.totalorder %v305, %v321
    %vm668 = vcmp.lt.s32.totalorder %v304, %v322
    %vm669 = vcmp.lt.s32.totalorder %v305, %v322
    %vm670 = vcmp.lt.s32.totalorder %v304, %v323
    %vm671 = vcmp.lt.s32.totalorder %v305, %v323
    %vm672 = vcmp.lt.s32.totalorder %v304, %v324
    %vm673 = vcmp.lt.s32.totalorder %v305, %v324
    %vm674 = vcmp.lt.s32.totalorder %v304, %v325
    %vm675 = vcmp.lt.s32.totalorder %v305, %v325
    %vm676 = vcmp.lt.s32.totalorder %v304, %v326
    %vm677 = vcmp.lt.s32.totalorder %v305, %v326
    %vm678 = vcmp.lt.s32.totalorder %v304, %v327
    %vm679 = vcmp.lt.s32.totalorder %v305, %v327
    %vm680 = vcmp.lt.s32.totalorder %v304, %v328
    %vm681 = vcmp.lt.s32.totalorder %v305, %v328
    %vm682 = vcmp.lt.s32.totalorder %v304, %v329
    %vm683 = vcmp.lt.s32.totalorder %v305, %v329
    %vm684 = vcmp.lt.s32.totalorder %v304, %v330
    %vm685 = vcmp.lt.s32.totalorder %v305, %v330
    %vm686 = vcmp.lt.s32.totalorder %v304, %v331
    %vm687 = vcmp.lt.s32.totalorder %v305, %v331
    %vm688 = vcmp.lt.s32.totalorder %v304, %v332
    %vm689 = vcmp.lt.s32.totalorder %v305, %v332
    %vm690 = vcmp.lt.s32.totalorder %v304, %v333
    %vm691 = vcmp.lt.s32.totalorder %v305, %v333
    %vm692 = vcmp.lt.s32.totalorder %v304, %v334
    %vm693 = vcmp.lt.s32.totalorder %v305, %v334
    %vm694 = vcmp.lt.s32.totalorder %v304, %v335
    %vm695 = vcmp.lt.s32.totalorder %v305, %v335
    %vm696 = vcmp.lt.s32.totalorder %v304, %v336
    %vm697 = vcmp.lt.s32.totalorder %v305, %v336
    %vm698 = vcmp.lt.s32.totalorder %v304, %v337
    %vm699 = vcmp.lt.s32.totalorder %v305, %v337
    %vm700 = vcmp.lt.s32.totalorder %v304, %v338
    %vm701 = vcmp.lt.s32.totalorder %v305, %v338
    %vm702 = vmand %vm574, %vm638
    %vm703 = vmand %vm575, %vm639
    %vm704 = vmand %vm576, %vm640
    %vm705 = vmand %vm577, %vm641
    %vm706 = vmand %vm578, %vm642
    %vm707 = vmand %vm579, %vm643
    %vm708 = vmand %vm580, %vm644
    %vm709 = vmand %vm581, %vm645
    %vm710 = vmand %vm582, %vm646
    %vm711 = vmand %vm583, %vm647
    %vm712 = vmand %vm584, %vm648
    %vm713 = vmand %vm585, %vm649
    %vm714 = vmand %vm586, %vm650
    %vm715 = vmand %vm587, %vm651
    %vm716 = vmand %vm588, %vm652
    %vm717 = vmand %vm589, %vm653
    %vm718 = vmand %vm590, %vm654
    %vm719 = vmand %vm591, %vm655
    %vm720 = vmand %vm592, %vm656
    %vm721 = vmand %vm593, %vm657
    %vm722 = vmand %vm594, %vm658
    %vm723 = vmand %vm595, %vm659
    %vm724 = vmand %vm596, %vm660
    %vm725 = vmand %vm597, %vm661
    %vm726 = vmand %vm598, %vm662
    %vm727 = vmand %vm599, %vm663
    %vm728 = vmand %vm600, %vm664
    %vm729 = vmand %vm601, %vm665
    %vm730 = vmand %vm602, %vm666
    %vm731 = vmand %vm603, %vm667
    %vm732 = vmand %vm604, %vm668
    %vm733 = vmand %vm605, %vm669
    %vm734 = vmand %vm606, %vm670
    %vm735 = vmand %vm607, %vm671
    %vm736 = vmand %vm608, %vm672
    %vm737 = vmand %vm609, %vm673
    %vm738 = vmand %vm610, %vm674
    %vm739 = vmand %vm611, %vm675
    %vm740 = vmand %vm612, %vm676
    %vm741 = vmand %vm613, %vm677
    %vm742 = vmand %vm614, %vm678
    %vm743 = vmand %vm615, %vm679
    %vm744 = vmand %vm616, %vm680
    %vm745 = vmand %vm617, %vm681
    %vm746 = vmand %vm618, %vm682
    %vm747 = vmand %vm619, %vm683
    %vm748 = vmand %vm620, %vm684
    %vm749 = vmand %vm621, %vm685
    %vm750 = vmand %vm622, %vm686
    %vm751 = vmand %vm623, %vm687
    %vm752 = vmand %vm624, %vm688
    %vm753 = vmand %vm625, %vm689
    %vm754 = vmand %vm626, %vm690
    %vm755 = vmand %vm627, %vm691
    %vm756 = vmand %vm628, %vm692
    %vm757 = vmand %vm629, %vm693
    %vm758 = vmand %vm630, %vm694
    %vm759 = vmand %vm631, %vm695
    %vm760 = vmand %vm632, %vm696
    %vm761 = vmand %vm633, %vm697
    %vm762 = vmand %vm634, %vm698
    %vm763 = vmand %vm635, %vm699
    %vm764 = vmand %vm636, %vm700
    %vm765 = vmand %vm637, %vm701
    %vm766 = vmor %vm510, %vm702
    %vm767 = vmor %vm511, %vm703
    %vm768 = vmor %vm512, %vm704
    %vm769 = vmor %vm513, %vm705
    %vm770 = vmor %vm514, %vm706
    %vm771 = vmor %vm515, %vm707
    %vm772 = vmor %vm516, %vm708
    %vm773 = vmor %vm517, %vm709
    %vm774 = vmor %vm518, %vm710
    %vm775 = vmor %vm519, %vm711
    %vm776 = vmor %vm520, %vm712
    %vm777 = vmor %vm521, %vm713
    %vm778 = vmor %vm522, %vm714
    %vm779 = vmor %vm523, %vm715
    %vm780 = vmor %vm524, %vm716
    %vm781 = vmor %vm525, %vm717
    %vm782 = vmor %vm526, %vm718
    %vm783 = vmor %vm527, %vm719
    %vm784 = vmor %vm528, %vm720
    %vm785 = vmor %vm529, %vm721
    %vm786 = vmor %vm530, %vm722
    %vm787 = vmor %vm531, %vm723
    %vm788 = vmor %vm532, %vm724
    %vm789 = vmor %vm533, %vm725
    %vm790 = vmor %vm534, %vm726
    %vm791 = vmor %vm535, %vm727
    %vm792 = vmor %vm536, %vm728
    %vm793 = vmor %vm537, %vm729
    %vm794 = vmor %vm538, %vm730
    %vm795 = vmor %vm539, %vm731
    %vm796 = vmor %vm540, %vm732
    %vm797 = vmor %vm541, %vm733
    %vm798 = vmor %vm542, %vm734
    %vm799 = vmor %vm543, %vm735
    %vm800 = vmor %vm544, %vm736
    %vm801 = vmor %vm545, %vm737
    %vm802 = vmor %vm546, %vm738
    %vm803 = vmor %vm547, %vm739
    %vm804 = vmor %vm548, %vm740
    %vm805 = vmor %vm549, %vm741
    %vm806 = vmor %vm550, %vm742
    %vm807 = vmor %vm551, %vm743
    %vm808 = vmor %vm552, %vm744
    %vm809 = vmor %vm553, %vm745
    %vm810 = vmor %vm554, %vm746
    %vm811 = vmor %vm555, %vm747
    %vm812 = vmor %vm556, %vm748
    %vm813 = vmor %vm557, %vm749
    %vm814 = vmor %vm558, %vm750
    %vm815 = vmor %vm559, %vm751
    %vm816 = vmor %vm560, %vm752
    %vm817 = vmor %vm561, %vm753
    %vm818 = vmor %vm562, %vm754
    %vm819 = vmor %vm563, %vm755
    %vm820 = vmor %vm564, %vm756
    %vm821 = vmor %vm565, %vm757
    %vm822 = vmor %vm566, %vm758
    %vm823 = vmor %vm567, %vm759
    %vm824 = vmor %vm568, %vm760
    %vm825 = vmor %vm569, %vm761
    %vm826 = vmor %vm570, %vm762
    %vm827 = vmor %vm571, %vm763
    %vm828 = vmor %vm572, %vm764
    %vm829 = vmor %vm573, %vm765
    %v830 = vsel %vm766, 1, 0
    %v831 = vsel %vm767, 1, 0
    %v832 = vsel %vm768, 1, 0
    %v833 = vsel %vm769, 1, 0
    %v834 = vsel %vm770, 1, 0
    %v835 = vsel %vm771, 1, 0
    %v836 = vsel %vm772, 1, 0
    %v837 = vsel %vm773, 1, 0
    %v838 = vsel %vm774, 1, 0
    %v839 = vsel %vm775, 1, 0
    %v840 = vsel %vm776, 1, 0
    %v841 = vsel %vm777, 1, 0
    %v842 = vsel %vm778, 1, 0
    %v843 = vsel %vm779, 1, 0
    %v844 = vsel %vm780, 1, 0
    %v845 = vsel %vm781, 1, 0
    %v846 = vsel %vm782, 1, 0
    %v847 = vsel %vm783, 1, 0
    %v848 = vsel %vm784, 1, 0
    %v849 = vsel %vm785, 1, 0
    %v850 = vsel %vm786, 1, 0
    %v851 = vsel %vm787, 1, 0
    %v852 = vsel %vm788, 1, 0
    %v853 = vsel %vm789, 1, 0
    %v854 = vsel %vm790, 1, 0
    %v855 = vsel %vm791, 1, 0
    %v856 = vsel %vm792, 1, 0
    %v857 = vsel %vm793, 1, 0
    %v858 = vsel %vm794, 1, 0
    %v859 = vsel %vm795, 1, 0
    %v860 = vsel %vm796, 1, 0
    %v861 = vsel %vm797, 1, 0
    %v862 = vsel %vm798, 1, 0
    %v863 = vsel %vm799, 1, 0
    %v864 = vsel %vm800, 1, 0
    %v865 = vsel %vm801, 1, 0
    %v866 = vsel %vm802, 1, 0
    %v867 = vsel %vm803, 1, 0
    %v868 = vsel %vm804, 1, 0
    %v869 = vsel %vm805, 1, 0
    %v870 = vsel %vm806, 1, 0
    %v871 = vsel %vm807, 1, 0
    %v872 = vsel %vm808, 1, 0
    %v873 = vsel %vm809, 1, 0
    %v874 = vsel %vm810, 1, 0
    %v875 = vsel %vm811, 1, 0
    %v876 = vsel %vm812, 1, 0
    %v877 = vsel %vm813, 1, 0
    %v878 = vsel %vm814, 1, 0
    %v879 = vsel %vm815, 1, 0
    %v880 = vsel %vm816, 1, 0
    %v881 = vsel %vm817, 1, 0
    %v882 = vsel %vm818, 1, 0
    %v883 = vsel %vm819, 1, 0
    %v884 = vsel %vm820, 1, 0
    %v885 = vsel %vm821, 1, 0
    %v886 = vsel %vm822, 1, 0
    %v887 = vsel %vm823, 1, 0
    %v888 = vsel %vm824, 1, 0
    %v889 = vsel %vm825, 1, 0
    %v890 = vsel %vm826, 1, 0
    %v891 = vsel %vm827, 1, 0
    %v892 = vsel %vm828, 1, 0
    %v893 = vsel %vm829, 1, 0
    %v894 = vcvt.s32.f32 %v830
    %v895 = vcvt.s32.f32 %v831
    %v896 = vcvt.s32.f32 %v832
    %v897 = vcvt.s32.f32 %v833
    %v898 = vcvt.s32.f32 %v834
    %v899 = vcvt.s32.f32 %v835
    %v900 = vcvt.s32.f32 %v836
    %v901 = vcvt.s32.f32 %v837
    %v902 = vcvt.s32.f32 %v838
    %v903 = vcvt.s32.f32 %v839
    %v904 = vcvt.s32.f32 %v840
    %v905 = vcvt.s32.f32 %v841
    %v906 = vcvt.s32.f32 %v842
    %v907 = vcvt.s32.f32 %v843
    %v908 = vcvt.s32.f32 %v844
    %v909 = vcvt.s32.f32 %v845
    %v910 = vcvt.s32.f32 %v846
    %v911 = vcvt.s32.f32 %v847
    %v912 = vcvt.s32.f32 %v848
    %v913 = vcvt.s32.f32 %v849
    %v914 = vcvt.s32.f32 %v850
    %v915 = vcvt.s32.f32 %v851
    %v916 = vcvt.s32.f32 %v852
    %v917 = vcvt.s32.f32 %v853
    %v918 = vcvt.s32.f32 %v854
    %v919 = vcvt.s32.f32 %v855
    %v920 = vcvt.s32.f32 %v856
    %v921 = vcvt.s32.f32 %v857
    %v922 = vcvt.s32.f32 %v858
    %v923 = vcvt.s32.f32 %v859
    %v924 = vcvt.s32.f32 %v860
    %v925 = vcvt.s32.f32 %v861
    %v926 = vcvt.s32.f32 %v862
    %v927 = vcvt.s32.f32 %v863
    %v928 = vcvt.s32.f32 %v864
    %v929 = vcvt.s32.f32 %v865
    %v930 = vcvt.s32.f32 %v866
    %v931 = vcvt.s32.f32 %v867
    %v932 = vcvt.s32.f32 %v868
    %v933 = vcvt.s32.f32 %v869
    %v934 = vcvt.s32.f32 %v870
    %v935 = vcvt.s32.f32 %v871
    %v936 = vcvt.s32.f32 %v872
    %v937 = vcvt.s32.f32 %v873
    %v938 = vcvt.s32.f32 %v874
    %v939 = vcvt.s32.f32 %v875
    %v940 = vcvt.s32.f32 %v876
    %v941 = vcvt.s32.f32 %v877
    %v942 = vcvt.s32.f32 %v878
    %v943 = vcvt.s32.f32 %v879
    %v944 = vcvt.s32.f32 %v880
    %v945 = vcvt.s32.f32 %v881
    %v946 = vcvt.s32.f32 %v882
    %v947 = vcvt.s32.f32 %v883
    %v948 = vcvt.s32.f32 %v884
    %v949 = vcvt.s32.f32 %v885
    %v950 = vcvt.s32.f32 %v886
    %v951 = vcvt.s32.f32 %v887
    %v952 = vcvt.s32.f32 %v888
    %v953 = vcvt.s32.f32 %v889
    %v954 = vcvt.s32.f32 %v890
    %v955 = vcvt.s32.f32 %v891
    %v956 = vcvt.s32.f32 %v892
    %v957 = vcvt.s32.f32 %v893
    %v958 = vpack.c.bf16 %v896, %v894
    %v959 = vpack.c.bf16 %v897, %v895
    %v960 = vpack.c.bf16 %v900, %v898
    %v961 = vpack.c.bf16 %v901, %v899
    %v962 = vpack.c.bf16 %v904, %v902
    %v963 = vpack.c.bf16 %v905, %v903
    %v964 = vpack.c.bf16 %v908, %v906
    %v965 = vpack.c.bf16 %v909, %v907
    %v966 = vpack.c.bf16 %v912, %v910
    %v967 = vpack.c.bf16 %v913, %v911
    %v968 = vpack.c.bf16 %v916, %v914
    %v969 = vpack.c.bf16 %v917, %v915
    %v970 = vpack.c.bf16 %v920, %v918
    %v971 = vpack.c.bf16 %v921, %v919
    %v972 = vpack.c.bf16 %v924, %v922
    %v973 = vpack.c.bf16 %v925, %v923
    %v974 = vpack.c.bf16 %v928, %v926
    %v975 = vpack.c.bf16 %v929, %v927
    %v976 = vpack.c.bf16 %v932, %v930
    %v977 = vpack.c.bf16 %v933, %v931
    %v978 = vpack.c.bf16 %v936, %v934
    %v979 = vpack.c.bf16 %v937, %v935
    %v980 = vpack.c.bf16 %v940, %v938
    %v981 = vpack.c.bf16 %v941, %v939
    %v982 = vpack.c.bf16 %v944, %v942
    %v983 = vpack.c.bf16 %v945, %v943
    %v984 = vpack.c.bf16 %v948, %v946
    %v985 = vpack.c.bf16 %v949, %v947
    %v986 = vpack.c.bf16 %v952, %v950
    %v987 = vpack.c.bf16 %v953, %v951
    %v988 = vpack.c.bf16 %v956, %v954
    %v989 = vpack.c.bf16 %v957, %v955
    %s990 = sld [smem:[#allocation9]]
    %v991 = vstv %s990
    %vm992 = vcmp.eq.s32.totalorder %v307, %v991
    %vm993 = vcmp.eq.s32.totalorder %v308, %v991
    %vm994 = vcmp.eq.s32.totalorder %v309, %v991
    %vm995 = vcmp.eq.s32.totalorder %v310, %v991
    %vm996 = vcmp.eq.s32.totalorder %v311, %v991
    %vm997 = vcmp.eq.s32.totalorder %v312, %v991
    %vm998 = vcmp.eq.s32.totalorder %v313, %v991
    %vm999 = vcmp.eq.s32.totalorder %v314, %v991
    %vm1000 = vcmp.eq.s32.totalorder %v315, %v991
    %vm1001 = vcmp.eq.s32.totalorder %v316, %v991
    %vm1002 = vcmp.eq.s32.totalorder %v317, %v991
    %vm1003 = vcmp.eq.s32.totalorder %v318, %v991
    %vm1004 = vcmp.eq.s32.totalorder %v319, %v991
    %vm1005 = vcmp.eq.s32.totalorder %v320, %v991
    %vm1006 = vcmp.eq.s32.totalorder %v321, %v991
    %vm1007 = vcmp.eq.s32.totalorder %v322, %v991
    %vm1008 = vcmp.eq.s32.totalorder %v323, %v991
    %vm1009 = vcmp.eq.s32.totalorder %v324, %v991
    %vm1010 = vcmp.eq.s32.totalorder %v325, %v991
    %vm1011 = vcmp.eq.s32.totalorder %v326, %v991
    %vm1012 = vcmp.eq.s32.totalorder %v327, %v991
    %vm1013 = vcmp.eq.s32.totalorder %v328, %v991
    %vm1014 = vcmp.eq.s32.totalorder %v329, %v991
    %vm1015 = vcmp.eq.s32.totalorder %v330, %v991
    %vm1016 = vcmp.eq.s32.totalorder %v331, %v991
    %vm1017 = vcmp.eq.s32.totalorder %v332, %v991
    %vm1018 = vcmp.eq.s32.totalorder %v333, %v991
    %vm1019 = vcmp.eq.s32.totalorder %v334, %v991
    %vm1020 = vcmp.eq.s32.totalorder %v335, %v991
    %vm1021 = vcmp.eq.s32.totalorder %v336, %v991
    %vm1022 = vcmp.eq.s32.totalorder %v337, %v991
    %vm1023 = vcmp.eq.s32.totalorder %v338, %v991
    %s1024 = sld [smem:[#allocation9 + $0x1]]
    %v1025 = vstv %s1024
    %vm1026 = vcmp.eq.s32.totalorder %v307, %v1025
    %vm1027 = vcmp.eq.s32.totalorder %v308, %v1025
    %vm1028 = vcmp.eq.s32.totalorder %v309, %v1025
    %vm1029 = vcmp.eq.s32.totalorder %v310, %v1025
    %vm1030 = vcmp.eq.s32.totalorder %v311, %v1025
    %vm1031 = vcmp.eq.s32.totalorder %v312, %v1025
    %vm1032 = vcmp.eq.s32.totalorder %v313, %v1025
    %vm1033 = vcmp.eq.s32.totalorder %v314, %v1025
    %vm1034 = vcmp.eq.s32.totalorder %v315, %v1025
    %vm1035 = vcmp.eq.s32.totalorder %v316, %v1025
    %vm1036 = vcmp.eq.s32.totalorder %v317, %v1025
    %vm1037 = vcmp.eq.s32.totalorder %v318, %v1025
    %vm1038 = vcmp.eq.s32.totalorder %v319, %v1025
    %vm1039 = vcmp.eq.s32.totalorder %v320, %v1025
    %vm1040 = vcmp.eq.s32.totalorder %v321, %v1025
    %vm1041 = vcmp.eq.s32.totalorder %v322, %v1025
    %vm1042 = vcmp.eq.s32.totalorder %v323, %v1025
    %vm1043 = vcmp.eq.s32.totalorder %v324, %v1025
    %vm1044 = vcmp.eq.s32.totalorder %v325, %v1025
    %vm1045 = vcmp.eq.s32.totalorder %v326, %v1025
    %vm1046 = vcmp.eq.s32.totalorder %v327, %v1025
    %vm1047 = vcmp.eq.s32.totalorder %v328, %v1025
    %vm1048 = vcmp.eq.s32.totalorder %v329, %v1025
    %vm1049 = vcmp.eq.s32.totalorder %v330, %v1025
    %vm1050 = vcmp.eq.s32.totalorder %v331, %v1025
    %vm1051 = vcmp.eq.s32.totalorder %v332, %v1025
    %vm1052 = vcmp.eq.s32.totalorder %v333, %v1025
    %vm1053 = vcmp.eq.s32.totalorder %v334, %v1025
    %vm1054 = vcmp.eq.s32.totalorder %v335, %v1025
    %vm1055 = vcmp.eq.s32.totalorder %v336, %v1025
    %vm1056 = vcmp.eq.s32.totalorder %v337, %v1025
    %vm1057 = vcmp.eq.s32.totalorder %v338, %v1025
    %vm1058 = vmor %vm992, %vm1026
    %vm1059 = vmor %vm993, %vm1027
    %vm1060 = vmor %vm994, %vm1028
    %vm1061 = vmor %vm995, %vm1029
    %vm1062 = vmor %vm996, %vm1030
    %vm1063 = vmor %vm997, %vm1031
    %vm1064 = vmor %vm998, %vm1032
    %vm1065 = vmor %vm999, %vm1033
    %vm1066 = vmor %vm1000, %vm1034
    %vm1067 = vmor %vm1001, %vm1035
    %vm1068 = vmor %vm1002, %vm1036
    %vm1069 = vmor %vm1003, %vm1037
    %vm1070 = vmor %vm1004, %vm1038
    %vm1071 = vmor %vm1005, %vm1039
    %vm1072 = vmor %vm1006, %vm1040
    %vm1073 = vmor %vm1007, %vm1041
    %vm1074 = vmor %vm1008, %vm1042
    %vm1075 = vmor %vm1009, %vm1043
    %vm1076 = vmor %vm1010, %vm1044
    %vm1077 = vmor %vm1011, %vm1045
    %vm1078 = vmor %vm1012, %vm1046
    %vm1079 = vmor %vm1013, %vm1047
    %vm1080 = vmor %vm1014, %vm1048
    %vm1081 = vmor %vm1015, %vm1049
    %vm1082 = vmor %vm1016, %vm1050
    %vm1083 = vmor %vm1017, %vm1051
    %vm1084 = vmor %vm1018, %vm1052
    %vm1085 = vmor %vm1019, %vm1053
    %vm1086 = vmor %vm1020, %vm1054
    %vm1087 = vmor %vm1021, %vm1055
    %vm1088 = vmor %vm1022, %vm1056
    %vm1089 = vmor %vm1023, %vm1057
    %s1090 = sld [smem:[#allocation9 + $0x2]]
    %v1091 = vstv %s1090
    %vm1092 = vcmp.eq.s32.totalorder %v307, %v1091
    %vm1093 = vcmp.eq.s32.totalorder %v308, %v1091
    %vm1094 = vcmp.eq.s32.totalorder %v309, %v1091
    %vm1095 = vcmp.eq.s32.totalorder %v310, %v1091
    %vm1096 = vcmp.eq.s32.totalorder %v311, %v1091
    %vm1097 = vcmp.eq.s32.totalorder %v312, %v1091
    %vm1098 = vcmp.eq.s32.totalorder %v313, %v1091
    %vm1099 = vcmp.eq.s32.totalorder %v314, %v1091
    %vm1100 = vcmp.eq.s32.totalorder %v315, %v1091
    %vm1101 = vcmp.eq.s32.totalorder %v316, %v1091
    %vm1102 = vcmp.eq.s32.totalorder %v317, %v1091
    %vm1103 = vcmp.eq.s32.totalorder %v318, %v1091
    %vm1104 = vcmp.eq.s32.totalorder %v319, %v1091
    %vm1105 = vcmp.eq.s32.totalorder %v320, %v1091
    %vm1106 = vcmp.eq.s32.totalorder %v321, %v1091
    %vm1107 = vcmp.eq.s32.totalorder %v322, %v1091
    %vm1108 = vcmp.eq.s32.totalorder %v323, %v1091
    %vm1109 = vcmp.eq.s32.totalorder %v324, %v1091
    %vm1110 = vcmp.eq.s32.totalorder %v325, %v1091
    %vm1111 = vcmp.eq.s32.totalorder %v326, %v1091
    %vm1112 = vcmp.eq.s32.totalorder %v327, %v1091
    %vm1113 = vcmp.eq.s32.totalorder %v328, %v1091
    %vm1114 = vcmp.eq.s32.totalorder %v329, %v1091
    %vm1115 = vcmp.eq.s32.totalorder %v330, %v1091
    %vm1116 = vcmp.eq.s32.totalorder %v331, %v1091
    %vm1117 = vcmp.eq.s32.totalorder %v332, %v1091
    %vm1118 = vcmp.eq.s32.totalorder %v333, %v1091
    %vm1119 = vcmp.eq.s32.totalorder %v334, %v1091
    %vm1120 = vcmp.eq.s32.totalorder %v335, %v1091
    %vm1121 = vcmp.eq.s32.totalorder %v336, %v1091
    %vm1122 = vcmp.eq.s32.totalorder %v337, %v1091
    %vm1123 = vcmp.eq.s32.totalorder %v338, %v1091
    %vm1124 = vmor %vm1058, %vm1092
    %vm1125 = vmor %vm1059, %vm1093
    %vm1126 = vmor %vm1060, %vm1094
    %vm1127 = vmor %vm1061, %vm1095
    %vm1128 = vmor %vm1062, %vm1096
    %vm1129 = vmor %vm1063, %vm1097
    %vm1130 = vmor %vm1064, %vm1098
    %vm1131 = vmor %vm1065, %vm1099
    %vm1132 = vmor %vm1066, %vm1100
    %vm1133 = vmor %vm1067, %vm1101
    %vm1134 = vmor %vm1068, %vm1102
    %vm1135 = vmor %vm1069, %vm1103
    %vm1136 = vmor %vm1070, %vm1104
    %vm1137 = vmor %vm1071, %vm1105
    %vm1138 = vmor %vm1072, %vm1106
    %vm1139 = vmor %vm1073, %vm1107
    %vm1140 = vmor %vm1074, %vm1108
    %vm1141 = vmor %vm1075, %vm1109
    %vm1142 = vmor %vm1076, %vm1110
    %vm1143 = vmor %vm1077, %vm1111
    %vm1144 = vmor %vm1078, %vm1112
    %vm1145 = vmor %vm1079, %vm1113
    %vm1146 = vmor %vm1080, %vm1114
    %vm1147 = vmor %vm1081, %vm1115
    %vm1148 = vmor %vm1082, %vm1116
    %vm1149 = vmor %vm1083, %vm1117
    %vm1150 = vmor %vm1084, %vm1118
    %vm1151 = vmor %vm1085, %vm1119
    %vm1152 = vmor %vm1086, %vm1120
    %vm1153 = vmor %vm1087, %vm1121
    %vm1154 = vmor %vm1088, %vm1122
    %vm1155 = vmor %vm1089, %vm1123
    %s1156 = sld [smem:[#allocation9 + $0x3]]
    %v1157 = vstv %s1156
    %vm1158 = vcmp.eq.s32.totalorder %v307, %v1157
    %vm1159 = vcmp.eq.s32.totalorder %v308, %v1157
    %vm1160 = vcmp.eq.s32.totalorder %v309, %v1157
    %vm1161 = vcmp.eq.s32.totalorder %v310, %v1157
    %vm1162 = vcmp.eq.s32.totalorder %v311, %v1157
    %vm1163 = vcmp.eq.s32.totalorder %v312, %v1157
    %vm1164 = vcmp.eq.s32.totalorder %v313, %v1157
    %vm1165 = vcmp.eq.s32.totalorder %v314, %v1157
    %vm1166 = vcmp.eq.s32.totalorder %v315, %v1157
    %vm1167 = vcmp.eq.s32.totalorder %v316, %v1157
    %vm1168 = vcmp.eq.s32.totalorder %v317, %v1157
    %vm1169 = vcmp.eq.s32.totalorder %v318, %v1157
    %vm1170 = vcmp.eq.s32.totalorder %v319, %v1157
    %vm1171 = vcmp.eq.s32.totalorder %v320, %v1157
    %vm1172 = vcmp.eq.s32.totalorder %v321, %v1157
    %vm1173 = vcmp.eq.s32.totalorder %v322, %v1157
    %vm1174 = vcmp.eq.s32.totalorder %v323, %v1157
    %vm1175 = vcmp.eq.s32.totalorder %v324, %v1157
    %vm1176 = vcmp.eq.s32.totalorder %v325, %v1157
    %vm1177 = vcmp.eq.s32.totalorder %v326, %v1157
    %vm1178 = vcmp.eq.s32.totalorder %v327, %v1157
    %vm1179 = vcmp.eq.s32.totalorder %v328, %v1157
    %vm1180 = vcmp.eq.s32.totalorder %v329, %v1157
    %vm1181 = vcmp.eq.s32.totalorder %v330, %v1157
    %vm1182 = vcmp.eq.s32.totalorder %v331, %v1157
    %vm1183 = vcmp.eq.s32.totalorder %v332, %v1157
    %vm1184 = vcmp.eq.s32.totalorder %v333, %v1157
    %vm1185 = vcmp.eq.s32.totalorder %v334, %v1157
    %vm1186 = vcmp.eq.s32.totalorder %v335, %v1157
    %vm1187 = vcmp.eq.s32.totalorder %v336, %v1157
    %vm1188 = vcmp.eq.s32.totalorder %v337, %v1157
    %vm1189 = vcmp.eq.s32.totalorder %v338, %v1157
    %vm1190 = vmor %vm1124, %vm1158
    %vm1191 = vmor %vm1125, %vm1159
    %vm1192 = vmor %vm1126, %vm1160
    %vm1193 = vmor %vm1127, %vm1161
    %vm1194 = vmor %vm1128, %vm1162
    %vm1195 = vmor %vm1129, %vm1163
    %vm1196 = vmor %vm1130, %vm1164
    %vm1197 = vmor %vm1131, %vm1165
    %vm1198 = vmor %vm1132, %vm1166
    %vm1199 = vmor %vm1133, %vm1167
    %vm1200 = vmor %vm1134, %vm1168
    %vm1201 = vmor %vm1135, %vm1169
    %vm1202 = vmor %vm1136, %vm1170
    %vm1203 = vmor %vm1137, %vm1171
    %vm1204 = vmor %vm1138, %vm1172
    %vm1205 = vmor %vm1139, %vm1173
    %vm1206 = vmor %vm1140, %vm1174
    %vm1207 = vmor %vm1141, %vm1175
    %vm1208 = vmor %vm1142, %vm1176
    %vm1209 = vmor %vm1143, %vm1177
    %vm1210 = vmor %vm1144, %vm1178
    %vm1211 = vmor %vm1145, %vm1179
    %vm1212 = vmor %vm1146, %vm1180
    %vm1213 = vmor %vm1147, %vm1181
    %vm1214 = vmor %vm1148, %vm1182
    %vm1215 = vmor %vm1149, %vm1183
    %vm1216 = vmor %vm1150, %vm1184
    %vm1217 = vmor %vm1151, %vm1185
    %vm1218 = vmor %vm1152, %vm1186
    %vm1219 = vmor %vm1153, %vm1187
    %vm1220 = vmor %vm1154, %vm1188
    %vm1221 = vmor %vm1155, %vm1189
    %vm1222 = vmxor %vm1190, 1
    %vm1223 = vmxor %vm1191, 1
    %vm1224 = vmxor %vm1192, 1
    %vm1225 = vmxor %vm1193, 1
    %vm1226 = vmxor %vm1194, 1
    %vm1227 = vmxor %vm1195, 1
    %vm1228 = vmxor %vm1196, 1
    %vm1229 = vmxor %vm1197, 1
    %vm1230 = vmxor %vm1198, 1
    %vm1231 = vmxor %vm1199, 1
    %vm1232 = vmxor %vm1200, 1
    %vm1233 = vmxor %vm1201, 1
    %vm1234 = vmxor %vm1202, 1
    %vm1235 = vmxor %vm1203, 1
    %vm1236 = vmxor %vm1204, 1
    %vm1237 = vmxor %vm1205, 1
    %vm1238 = vmxor %vm1206, 1
    %vm1239 = vmxor %vm1207, 1
    %vm1240 = vmxor %vm1208, 1
    %vm1241 = vmxor %vm1209, 1
    %vm1242 = vmxor %vm1210, 1
    %vm1243 = vmxor %vm1211, 1
    %vm1244 = vmxor %vm1212, 1
    %vm1245 = vmxor %vm1213, 1
    %vm1246 = vmxor %vm1214, 1
    %vm1247 = vmxor %vm1215, 1
    %vm1248 = vmxor %vm1216, 1
    %vm1249 = vmxor %vm1217, 1
    %vm1250 = vmxor %vm1218, 1
    %vm1251 = vmxor %vm1219, 1
    %vm1252 = vmxor %vm1220, 1
    %vm1253 = vmxor %vm1221, 1
    %v1254 = vsel %vm1222, 1, 0
    %v1255 = vsel %vm1223, 1, 0
    %v1256 = vsel %vm1224, 1, 0
    %v1257 = vsel %vm1225, 1, 0
    %v1258 = vsel %vm1226, 1, 0
    %v1259 = vsel %vm1227, 1, 0
    %v1260 = vsel %vm1228, 1, 0
    %v1261 = vsel %vm1229, 1, 0
    %v1262 = vsel %vm1230, 1, 0
    %v1263 = vsel %vm1231, 1, 0
    %v1264 = vsel %vm1232, 1, 0
    %v1265 = vsel %vm1233, 1, 0
    %v1266 = vsel %vm1234, 1, 0
    %v1267 = vsel %vm1235, 1, 0
    %v1268 = vsel %vm1236, 1, 0
    %v1269 = vsel %vm1237, 1, 0
    %v1270 = vsel %vm1238, 1, 0
    %v1271 = vsel %vm1239, 1, 0
    %v1272 = vsel %vm1240, 1, 0
    %v1273 = vsel %vm1241, 1, 0
    %v1274 = vsel %vm1242, 1, 0
    %v1275 = vsel %vm1243, 1, 0
    %v1276 = vsel %vm1244, 1, 0
    %v1277 = vsel %vm1245, 1, 0
    %v1278 = vsel %vm1246, 1, 0
    %v1279 = vsel %vm1247, 1, 0
    %v1280 = vsel %vm1248, 1, 0
    %v1281 = vsel %vm1249, 1, 0
    %v1282 = vsel %vm1250, 1, 0
    %v1283 = vsel %vm1251, 1, 0
    %v1284 = vsel %vm1252, 1, 0
    %v1285 = vsel %vm1253, 1, 0
    %v1286 = vcvt.s32.f32 %v1254
    %v1287 = vcvt.s32.f32 %v1255
    %v1288 = vcvt.s32.f32 %v1256
    %v1289 = vcvt.s32.f32 %v1257
    %v1290 = vcvt.s32.f32 %v1258
    %v1291 = vcvt.s32.f32 %v1259
    %v1292 = vcvt.s32.f32 %v1260
    %v1293 = vcvt.s32.f32 %v1261
    %v1294 = vcvt.s32.f32 %v1262
    %v1295 = vcvt.s32.f32 %v1263
    %v1296 = vcvt.s32.f32 %v1264
    %v1297 = vcvt.s32.f32 %v1265
    %v1298 = vcvt.s32.f32 %v1266
    %v1299 = vcvt.s32.f32 %v1267
    %v1300 = vcvt.s32.f32 %v1268
    %v1301 = vcvt.s32.f32 %v1269
    %v1302 = vcvt.s32.f32 %v1270
    %v1303 = vcvt.s32.f32 %v1271
    %v1304 = vcvt.s32.f32 %v1272
    %v1305 = vcvt.s32.f32 %v1273
    %v1306 = vcvt.s32.f32 %v1274
    %v1307 = vcvt.s32.f32 %v1275
    %v1308 = vcvt.s32.f32 %v1276
    %v1309 = vcvt.s32.f32 %v1277
    %v1310 = vcvt.s32.f32 %v1278
    %v1311 = vcvt.s32.f32 %v1279
    %v1312 = vcvt.s32.f32 %v1280
    %v1313 = vcvt.s32.f32 %v1281
    %v1314 = vcvt.s32.f32 %v1282
    %v1315 = vcvt.s32.f32 %v1283
    %v1316 = vcvt.s32.f32 %v1284
    %v1317 = vcvt.s32.f32 %v1285
    %v1318 = vpack.c.bf16 %v1287, %v1286
    %v1319 = vpack.c.bf16 %v1289, %v1288
    %v1320 = vpack.c.bf16 %v1291, %v1290
    %v1321 = vpack.c.bf16 %v1293, %v1292
    %v1322 = vpack.c.bf16 %v1295, %v1294
    %v1323 = vpack.c.bf16 %v1297, %v1296
    %v1324 = vpack.c.bf16 %v1299, %v1298
    %v1325 = vpack.c.bf16 %v1301, %v1300
    %v1326 = vpack.c.bf16 %v1303, %v1302
    %v1327 = vpack.c.bf16 %v1305, %v1304
    %v1328 = vpack.c.bf16 %v1307, %v1306
    %v1329 = vpack.c.bf16 %v1309, %v1308
    %v1330 = vpack.c.bf16 %v1311, %v1310
    %v1331 = vpack.c.bf16 %v1313, %v1312
    %v1332 = vpack.c.bf16 %v1315, %v1314
    %v1333 = vpack.c.bf16 %v1317, %v1316
    %1334 = vmatprep.subr.bf16.mxu0 0
    %1335 = vmatpush1.bf16.msra.mxu0 1065369472
    %1336 = vmatprep.subr.bf16.mxu0 0
    %1337 = vmatpush1.bf16.msra.mxu0 1065369472
    %1338 = vmatprep.subr.bf16.mxu0 0
    %1339 = vmatpush1.bf16.msra.mxu0 1065369472
    %1340 = vmatprep.subr.bf16.mxu0 0
    %1341 = vmatpush1.bf16.msra.mxu0 1065369472
    %1342 = vmatprep.subr.bf16.mxu0 0
    %1343 = vmatpush1.bf16.msra.mxu0 1065369472
    %1344 = vmatprep.subr.bf16.mxu0 0
    %1345 = vmatpush1.bf16.msra.mxu0 1065369472
    %1346 = vmatprep.subr.bf16.mxu0 0
    %1347 = vmatpush1.bf16.msra.mxu0 1065369472
    %1348 = vmatprep.subr.bf16.mxu0 0
    %1349 = vmatpush1.bf16.msra.mxu0 1065369472
    %1350 = vmatprep.subr.bf16.mxu0 0
    %1351 = vmatpush2.bf16.msra.mxu0 1065369472
    %1352 = vmatprep.subr.bf16.mxu0 0
    %1353 = vmatpush2.bf16.msra.mxu0 1065369472
    %1354 = vmatprep.subr.bf16.mxu0 0
    %1355 = vmatpush2.bf16.msra.mxu0 1065369472
    %1356 = vmatprep.subr.bf16.mxu0 0
    %1357 = vmatpush2.bf16.msra.mxu0 1065369472
    %1358 = vmatprep.subr.bf16.mxu0 0
    %1359 = vmatpush2.bf16.msra.mxu0 1065369472
    %1360 = vmatprep.subr.bf16.mxu0 0
    %1361 = vmatpush2.bf16.msra.mxu0 1065369472
    %1362 = vmatprep.subr.bf16.mxu0 0
    %1363 = vmatpush2.bf16.msra.mxu0 1065369472
    %1364 = vmatprep.subr.bf16.mxu0 0
    %1365 = vmatpush2.bf16.msra.mxu0 1065369472
    %1366 = vmatprep.mubr.bf16.mxu0 %v959
    %1367 = vmatmul.mubr.bf16.gmra.mxu0 %v958
    %v1368 = vpop.f32.mrf.mxu0
    %v1369 = vadd.f32 0.0, %v1368
    %v1370 = vpop.f32.mrf.mxu0
    %v1371 = vpop.f32.mrf.mxu0
    %v1372 = vadd.f32 0.0, %v1371
    %v1373 = vpop.f32.mrf.mxu0
    %1374 = vmatprep.mubr.bf16.mxu0 %v961
    %1375 = vmatmul.mubr.bf16.gmra.mxu0 %v960
    %v1376 = vpop.f32.mrf.mxu0
    %v1377 = vadd.f32 0.0, %v1376
    %v1378 = vpop.f32.mrf.mxu0
    %v1379 = vpop.f32.mrf.mxu0
    %v1380 = vadd.f32 0.0, %v1379
    %v1381 = vpop.f32.mrf.mxu0
    %1382 = vmatprep.mubr.bf16.mxu0 %v963
    %1383 = vmatmul.mubr.bf16.gmra.mxu0 %v962
    %v1384 = vpop.f32.mrf.mxu0
    %v1385 = vadd.f32 0.0, %v1384
    %v1386 = vpop.f32.mrf.mxu0
    %v1387 = vpop.f32.mrf.mxu0
    %v1388 = vadd.f32 0.0, %v1387
    %v1389 = vpop.f32.mrf.mxu0
    %1390 = vmatprep.mubr.bf16.mxu0 %v965
    %1391 = vmatmul.mubr.bf16.gmra.mxu0 %v964
    %v1392 = vpop.f32.mrf.mxu0
    %v1393 = vadd.f32 0.0, %v1392
    %v1394 = vpop.f32.mrf.mxu0
    %v1395 = vpop.f32.mrf.mxu0
    %v1396 = vadd.f32 0.0, %v1395
    %v1397 = vpop.f32.mrf.mxu0
    %1398 = vmatprep.mubr.bf16.mxu0 %v967
    %1399 = vmatmul.mubr.bf16.gmra.mxu0 %v966
    %v1400 = vpop.f32.mrf.mxu0
    %v1401 = vadd.f32 0.0, %v1400
    %v1402 = vpop.f32.mrf.mxu0
    %v1403 = vpop.f32.mrf.mxu0
    %v1404 = vadd.f32 0.0, %v1403
    %v1405 = vpop.f32.mrf.mxu0
    %1406 = vmatprep.mubr.bf16.mxu0 %v969
    %1407 = vmatmul.mubr.bf16.gmra.mxu0 %v968
    %v1408 = vpop.f32.mrf.mxu0
    %v1409 = vadd.f32 0.0, %v1408
    %v1410 = vpop.f32.mrf.mxu0
    %v1411 = vpop.f32.mrf.mxu0
    %v1412 = vadd.f32 0.0, %v1411
    %v1413 = vpop.f32.mrf.mxu0
    %1414 = vmatprep.mubr.bf16.mxu0 %v971
    %1415 = vmatmul.mubr.bf16.gmra.mxu0 %v970
    %v1416 = vpop.f32.mrf.mxu0
    %v1417 = vadd.f32 0.0, %v1416
    %v1418 = vpop.f32.mrf.mxu0
    %v1419 = vpop.f32.mrf.mxu0
    %v1420 = vadd.f32 0.0, %v1419
    %v1421 = vpop.f32.mrf.mxu0
    %1422 = vmatprep.mubr.bf16.mxu0 %v973
    %1423 = vmatmul.mubr.bf16.gmra.mxu0 %v972
    %v1424 = vpop.f32.mrf.mxu0
    %v1425 = vadd.f32 0.0, %v1424
    %v1426 = vpop.f32.mrf.mxu0
    %v1427 = vpop.f32.mrf.mxu0
    %v1428 = vadd.f32 0.0, %v1427
    %v1429 = vpop.f32.mrf.mxu0
    %1430 = vmatprep.mubr.bf16.mxu0 %v975
    %1431 = vmatmul.mubr.bf16.gmra.mxu0 %v974
    %v1432 = vpop.f32.mrf.mxu0
    %v1433 = vadd.f32 0.0, %v1432
    %v1434 = vpop.f32.mrf.mxu0
    %v1435 = vpop.f32.mrf.mxu0
    %v1436 = vadd.f32 0.0, %v1435
    %v1437 = vpop.f32.mrf.mxu0
    %1438 = vmatprep.mubr.bf16.mxu0 %v977
    %1439 = vmatmul.mubr.bf16.gmra.mxu0 %v976
    %v1440 = vpop.f32.mrf.mxu0
    %v1441 = vadd.f32 0.0, %v1440
    %v1442 = vpop.f32.mrf.mxu0
    %v1443 = vpop.f32.mrf.mxu0
    %v1444 = vadd.f32 0.0, %v1443
    %v1445 = vpop.f32.mrf.mxu0
    %1446 = vmatprep.mubr.bf16.mxu0 %v979
    %1447 = vmatmul.mubr.bf16.gmra.mxu0 %v978
    %v1448 = vpop.f32.mrf.mxu0
    %v1449 = vadd.f32 0.0, %v1448
    %v1450 = vpop.f32.mrf.mxu0
    %v1451 = vpop.f32.mrf.mxu0
    %v1452 = vadd.f32 0.0, %v1451
    %v1453 = vpop.f32.mrf.mxu0
    %1454 = vmatprep.mubr.bf16.mxu0 %v981
    %1455 = vmatmul.mubr.bf16.gmra.mxu0 %v980
    %v1456 = vpop.f32.mrf.mxu0
    %v1457 = vadd.f32 0.0, %v1456
    %v1458 = vpop.f32.mrf.mxu0
    %v1459 = vpop.f32.mrf.mxu0
    %v1460 = vadd.f32 0.0, %v1459
    %v1461 = vpop.f32.mrf.mxu0
    %1462 = vmatprep.mubr.bf16.mxu0 %v983
    %1463 = vmatmul.mubr.bf16.gmra.mxu0 %v982
    %v1464 = vpop.f32.mrf.mxu0
    %v1465 = vadd.f32 0.0, %v1464
    %v1466 = vpop.f32.mrf.mxu0
    %v1467 = vpop.f32.mrf.mxu0
    %v1468 = vadd.f32 0.0, %v1467
    %v1469 = vpop.f32.mrf.mxu0
    %1470 = vmatprep.mubr.bf16.mxu0 %v985
    %1471 = vmatmul.mubr.bf16.gmra.mxu0 %v984
    %v1472 = vpop.f32.mrf.mxu0
    %v1473 = vadd.f32 0.0, %v1472
    %v1474 = vpop.f32.mrf.mxu0
    %v1475 = vpop.f32.mrf.mxu0
    %v1476 = vadd.f32 0.0, %v1475
    %v1477 = vpop.f32.mrf.mxu0
    %1478 = vmatprep.mubr.bf16.mxu0 %v987
    %1479 = vmatmul.mubr.bf16.gmra.mxu0 %v986
    %v1480 = vpop.f32.mrf.mxu0
    %v1481 = vadd.f32 0.0, %v1480
    %v1482 = vpop.f32.mrf.mxu0
    %v1483 = vpop.f32.mrf.mxu0
    %v1484 = vadd.f32 0.0, %v1483
    %v1485 = vpop.f32.mrf.mxu0
    %1486 = vmatprep.mubr.bf16.mxu0 %v989
    %1487 = vmatmul.mubr.bf16.gmra.mxu0 %v988
    %v1488 = vpop.f32.mrf.mxu0
    %v1489 = vadd.f32 0.0, %v1488
    %v1490 = vpop.f32.mrf.mxu0
    %v1491 = vpop.f32.mrf.mxu0
    %v1492 = vadd.f32 0.0, %v1491
    %v1493 = vpop.f32.mrf.mxu0
    %1494 = vdwg.mxu0
    %1495 = vmatprep.subr.bf16.mxu0 0
    %1496 = vmatpush1.bf16.msra.mxu0 %v1325
    %1497 = vmatprep.subr.bf16.mxu0 0
    %1498 = vmatpush1.bf16.msra.mxu0 %v1324
    %1499 = vmatprep.subr.bf16.mxu0 0
    %1500 = vmatpush1.bf16.msra.mxu0 %v1323
    %1501 = vmatprep.subr.bf16.mxu0 0
    %1502 = vmatpush1.bf16.msra.mxu0 %v1322
    %1503 = vmatprep.subr.bf16.mxu0 0
    %1504 = vmatpush1.bf16.msra.mxu0 %v1321
    %1505 = vmatprep.subr.bf16.mxu0 0
    %1506 = vmatpush1.bf16.msra.mxu0 %v1320
    %1507 = vmatprep.subr.bf16.mxu0 0
    %1508 = vmatpush1.bf16.msra.mxu0 %v1319
    %1509 = vmatprep.subr.bf16.mxu0 0
    %1510 = vmatpush1.bf16.msra.mxu0 %v1318
    %1511 = vmatprep.subr.bf16.mxu0 0
    %1512 = vmatpush2.bf16.msra.mxu0 %v1333
    %1513 = vmatprep.subr.bf16.mxu0 0
    %1514 = vmatpush2.bf16.msra.mxu0 %v1332
    %1515 = vmatprep.subr.bf16.mxu0 0
    %1516 = vmatpush2.bf16.msra.mxu0 %v1331
    %1517 = vmatprep.subr.bf16.mxu0 0
    %1518 = vmatpush2.bf16.msra.mxu0 %v1330
    %1519 = vmatprep.subr.bf16.mxu0 0
    %1520 = vmatpush2.bf16.msra.mxu0 %v1329
    %1521 = vmatprep.subr.bf16.mxu0 0
    %1522 = vmatpush2.bf16.msra.mxu0 %v1328
    %1523 = vmatprep.subr.bf16.mxu0 0
    %1524 = vmatpush2.bf16.msra.mxu0 %v1327
    %1525 = vmatprep.subr.bf16.mxu0 0
    %1526 = vmatpush2.bf16.msra.mxu0 %v1326
    %1527 = vmatprep.mubr.bf16.mxu0 %v959
    %1528 = vmatmul.mubr.bf16.gmra.mxu0 %v958
    %v1529 = vpop.f32.mrf.mxu0
    %v1530 = vadd.f32 0.0, %v1529
    %v1531 = vpop.f32.mrf.mxu0
    %v1532 = vpop.f32.mrf.mxu0
    %v1533 = vadd.f32 0.0, %v1532
    %v1534 = vpop.f32.mrf.mxu0
    %1535 = vmatprep.mubr.bf16.mxu0 %v961
    %1536 = vmatmul.mubr.bf16.gmra.mxu0 %v960
    %v1537 = vpop.f32.mrf.mxu0
    %v1538 = vadd.f32 0.0, %v1537
    %v1539 = vpop.f32.mrf.mxu0
    %v1540 = vpop.f32.mrf.mxu0
    %v1541 = vadd.f32 0.0, %v1540
    %v1542 = vpop.f32.mrf.mxu0
    %1543 = vmatprep.mubr.bf16.mxu0 %v963
    %1544 = vmatmul.mubr.bf16.gmra.mxu0 %v962
    %v1545 = vpop.f32.mrf.mxu0
    %v1546 = vadd.f32 0.0, %v1545
    %v1547 = vpop.f32.mrf.mxu0
    %v1548 = vpop.f32.mrf.mxu0
    %v1549 = vadd.f32 0.0, %v1548
    %v1550 = vpop.f32.mrf.mxu0
    %1551 = vmatprep.mubr.bf16.mxu0 %v965
    %1552 = vmatmul.mubr.bf16.gmra.mxu0 %v964
    %v1553 = vpop.f32.mrf.mxu0
    %v1554 = vadd.f32 0.0, %v1553
    %v1555 = vpop.f32.mrf.mxu0
    %v1556 = vpop.f32.mrf.mxu0
    %v1557 = vadd.f32 0.0, %v1556
    %v1558 = vpop.f32.mrf.mxu0
    %1559 = vmatprep.mubr.bf16.mxu0 %v967
    %1560 = vmatmul.mubr.bf16.gmra.mxu0 %v966
    %v1561 = vpop.f32.mrf.mxu0
    %v1562 = vadd.f32 0.0, %v1561
    %v1563 = vpop.f32.mrf.mxu0
    %v1564 = vpop.f32.mrf.mxu0
    %v1565 = vadd.f32 0.0, %v1564
    %v1566 = vpop.f32.mrf.mxu0
    %1567 = vmatprep.mubr.bf16.mxu0 %v969
    %1568 = vmatmul.mubr.bf16.gmra.mxu0 %v968
    %v1569 = vpop.f32.mrf.mxu0
    %v1570 = vadd.f32 0.0, %v1569
    %v1571 = vpop.f32.mrf.mxu0
    %v1572 = vpop.f32.mrf.mxu0
    %v1573 = vadd.f32 0.0, %v1572
    %v1574 = vpop.f32.mrf.mxu0
    %1575 = vmatprep.mubr.bf16.mxu0 %v971
    %1576 = vmatmul.mubr.bf16.gmra.mxu0 %v970
    %v1577 = vpop.f32.mrf.mxu0
    %v1578 = vadd.f32 0.0, %v1577
    %v1579 = vpop.f32.mrf.mxu0
    %v1580 = vpop.f32.mrf.mxu0
    %v1581 = vadd.f32 0.0, %v1580
    %v1582 = vpop.f32.mrf.mxu0
    %1583 = vmatprep.mubr.bf16.mxu0 %v973
    %1584 = vmatmul.mubr.bf16.gmra.mxu0 %v972
    %v1585 = vpop.f32.mrf.mxu0
    %v1586 = vadd.f32 0.0, %v1585
    %v1587 = vpop.f32.mrf.mxu0
    %v1588 = vpop.f32.mrf.mxu0
    %v1589 = vadd.f32 0.0, %v1588
    %v1590 = vpop.f32.mrf.mxu0
    %1591 = vmatprep.mubr.bf16.mxu0 %v975
    %1592 = vmatmul.mubr.bf16.gmra.mxu0 %v974
    %v1593 = vpop.f32.mrf.mxu0
    %v1594 = vadd.f32 0.0, %v1593
    %v1595 = vpop.f32.mrf.mxu0
    %v1596 = vpop.f32.mrf.mxu0
    %v1597 = vadd.f32 0.0, %v1596
    %v1598 = vpop.f32.mrf.mxu0
    %1599 = vmatprep.mubr.bf16.mxu0 %v977
    %1600 = vmatmul.mubr.bf16.gmra.mxu0 %v976
    %v1601 = vpop.f32.mrf.mxu0
    %v1602 = vadd.f32 0.0, %v1601
    %v1603 = vpop.f32.mrf.mxu0
    %v1604 = vpop.f32.mrf.mxu0
    %v1605 = vadd.f32 0.0, %v1604
    %v1606 = vpop.f32.mrf.mxu0
    %1607 = vmatprep.mubr.bf16.mxu0 %v979
    %1608 = vmatmul.mubr.bf16.gmra.mxu0 %v978
    %v1609 = vpop.f32.mrf.mxu0
    %v1610 = vadd.f32 0.0, %v1609
    %v1611 = vpop.f32.mrf.mxu0
    %v1612 = vpop.f32.mrf.mxu0
    %v1613 = vadd.f32 0.0, %v1612
    %v1614 = vpop.f32.mrf.mxu0
    %1615 = vmatprep.mubr.bf16.mxu0 %v981
    %1616 = vmatmul.mubr.bf16.gmra.mxu0 %v980
    %v1617 = vpop.f32.mrf.mxu0
    %v1618 = vadd.f32 0.0, %v1617
    %v1619 = vpop.f32.mrf.mxu0
    %v1620 = vpop.f32.mrf.mxu0
    %v1621 = vadd.f32 0.0, %v1620
    %v1622 = vpop.f32.mrf.mxu0
    %1623 = vmatprep.mubr.bf16.mxu0 %v983
    %1624 = vmatmul.mubr.bf16.gmra.mxu0 %v982
    %v1625 = vpop.f32.mrf.mxu0
    %v1626 = vadd.f32 0.0, %v1625
    %v1627 = vpop.f32.mrf.mxu0
    %v1628 = vpop.f32.mrf.mxu0
    %v1629 = vadd.f32 0.0, %v1628
    %v1630 = vpop.f32.mrf.mxu0
    %1631 = vmatprep.mubr.bf16.mxu0 %v985
    %1632 = vmatmul.mubr.bf16.gmra.mxu0 %v984
    %v1633 = vpop.f32.mrf.mxu0
    %v1634 = vadd.f32 0.0, %v1633
    %v1635 = vpop.f32.mrf.mxu0
    %v1636 = vpop.f32.mrf.mxu0
    %v1637 = vadd.f32 0.0, %v1636
    %v1638 = vpop.f32.mrf.mxu0
    %1639 = vmatprep.mubr.bf16.mxu0 %v987
    %1640 = vmatmul.mubr.bf16.gmra.mxu0 %v986
    %v1641 = vpop.f32.mrf.mxu0
    %v1642 = vadd.f32 0.0, %v1641
    %v1643 = vpop.f32.mrf.mxu0
    %v1644 = vpop.f32.mrf.mxu0
    %v1645 = vadd.f32 0.0, %v1644
    %v1646 = vpop.f32.mrf.mxu0
    %1647 = vmatprep.mubr.bf16.mxu0 %v989
    %1648 = vmatmul.mubr.bf16.gmra.mxu0 %v988
    %v1649 = vpop.f32.mrf.mxu0
    %v1650 = vadd.f32 0.0, %v1649
    %v1651 = vpop.f32.mrf.mxu0
    %v1652 = vpop.f32.mrf.mxu0
    %v1653 = vadd.f32 0.0, %v1652
    %v1654 = vpop.f32.mrf.mxu0
    %1655 = vdwg.mxu0
    %vm1656 = vcmp.lt.f32.partialorder %v1369, 16.0
    %vm1657 = vcmp.lt.f32.partialorder %v1372, 16.0
    %vm1658 = vcmp.lt.f32.partialorder %v1377, 16.0
    %vm1659 = vcmp.lt.f32.partialorder %v1380, 16.0
    %vm1660 = vcmp.lt.f32.partialorder %v1385, 16.0
    %vm1661 = vcmp.lt.f32.partialorder %v1388, 16.0
    %vm1662 = vcmp.lt.f32.partialorder %v1393, 16.0
    %vm1663 = vcmp.lt.f32.partialorder %v1396, 16.0
    %vm1664 = vcmp.lt.f32.partialorder %v1401, 16.0
    %vm1665 = vcmp.lt.f32.partialorder %v1404, 16.0
    %vm1666 = vcmp.lt.f32.partialorder %v1409, 16.0
    %vm1667 = vcmp.lt.f32.partialorder %v1412, 16.0
    %vm1668 = vcmp.lt.f32.partialorder %v1417, 16.0
    %vm1669 = vcmp.lt.f32.partialorder %v1420, 16.0
    %vm1670 = vcmp.lt.f32.partialorder %v1425, 16.0
    %vm1671 = vcmp.lt.f32.partialorder %v1428, 16.0
    %vm1672 = vcmp.lt.f32.partialorder %v1433, 16.0
    %vm1673 = vcmp.lt.f32.partialorder %v1436, 16.0
    %vm1674 = vcmp.lt.f32.partialorder %v1441, 16.0
    %vm1675 = vcmp.lt.f32.partialorder %v1444, 16.0
    %vm1676 = vcmp.lt.f32.partialorder %v1449, 16.0
    %vm1677 = vcmp.lt.f32.partialorder %v1452, 16.0
    %vm1678 = vcmp.lt.f32.partialorder %v1457, 16.0
    %vm1679 = vcmp.lt.f32.partialorder %v1460, 16.0
    %vm1680 = vcmp.lt.f32.partialorder %v1465, 16.0
    %vm1681 = vcmp.lt.f32.partialorder %v1468, 16.0
    %vm1682 = vcmp.lt.f32.partialorder %v1473, 16.0
    %vm1683 = vcmp.lt.f32.partialorder %v1476, 16.0
    %vm1684 = vcmp.lt.f32.partialorder %v1481, 16.0
    %vm1685 = vcmp.lt.f32.partialorder %v1484, 16.0
    %vm1686 = vcmp.lt.f32.partialorder %v1489, 16.0
    %vm1687 = vcmp.lt.f32.partialorder %v1492, 16.0
    %vm1688 = vcmp.eq.s32.totalorder %v1254, 1
    %vm1689 = vcmp.eq.s32.totalorder %v1255, 1
    %vm1690 = vcmp.eq.s32.totalorder %v1256, 1
    %vm1691 = vcmp.eq.s32.totalorder %v1257, 1
    %vm1692 = vcmp.eq.s32.totalorder %v1258, 1
    %vm1693 = vcmp.eq.s32.totalorder %v1259, 1
    %vm1694 = vcmp.eq.s32.totalorder %v1260, 1
    %vm1695 = vcmp.eq.s32.totalorder %v1261, 1
    %vm1696 = vcmp.eq.s32.totalorder %v1262, 1
    %vm1697 = vcmp.eq.s32.totalorder %v1263, 1
    %vm1698 = vcmp.eq.s32.totalorder %v1264, 1
    %vm1699 = vcmp.eq.s32.totalorder %v1265, 1
    %vm1700 = vcmp.eq.s32.totalorder %v1266, 1
    %vm1701 = vcmp.eq.s32.totalorder %v1267, 1
    %vm1702 = vcmp.eq.s32.totalorder %v1268, 1
    %vm1703 = vcmp.eq.s32.totalorder %v1269, 1
    %vm1704 = vcmp.eq.s32.totalorder %v1270, 1
    %vm1705 = vcmp.eq.s32.totalorder %v1271, 1
    %vm1706 = vcmp.eq.s32.totalorder %v1272, 1
    %vm1707 = vcmp.eq.s32.totalorder %v1273, 1
    %vm1708 = vcmp.eq.s32.totalorder %v1274, 1
    %vm1709 = vcmp.eq.s32.totalorder %v1275, 1
    %vm1710 = vcmp.eq.s32.totalorder %v1276, 1
    %vm1711 = vcmp.eq.s32.totalorder %v1277, 1
    %vm1712 = vcmp.eq.s32.totalorder %v1278, 1
    %vm1713 = vcmp.eq.s32.totalorder %v1279, 1
    %vm1714 = vcmp.eq.s32.totalorder %v1280, 1
    %vm1715 = vcmp.eq.s32.totalorder %v1281, 1
    %vm1716 = vcmp.eq.s32.totalorder %v1282, 1
    %vm1717 = vcmp.eq.s32.totalorder %v1283, 1
    %vm1718 = vcmp.eq.s32.totalorder %v1284, 1
    %vm1719 = vcmp.eq.s32.totalorder %v1285, 1
    %vm1720 = vmand %vm1656, %vm1688
    %vm1721 = vmand %vm1657, %vm1689
    %vm1722 = vmand %vm1658, %vm1690
    %vm1723 = vmand %vm1659, %vm1691
    %vm1724 = vmand %vm1660, %vm1692
    %vm1725 = vmand %vm1661, %vm1693
    %vm1726 = vmand %vm1662, %vm1694
    %vm1727 = vmand %vm1663, %vm1695
    %vm1728 = vmand %vm1664, %vm1696
    %vm1729 = vmand %vm1665, %vm1697
    %vm1730 = vmand %vm1666, %vm1698
    %vm1731 = vmand %vm1667, %vm1699
    %vm1732 = vmand %vm1668, %vm1700
    %vm1733 = vmand %vm1669, %vm1701
    %vm1734 = vmand %vm1670, %vm1702
    %vm1735 = vmand %vm1671, %vm1703
    %vm1736 = vmand %vm1672, %vm1704
    %vm1737 = vmand %vm1673, %vm1705
    %vm1738 = vmand %vm1674, %vm1706
    %vm1739 = vmand %vm1675, %vm1707
    %vm1740 = vmand %vm1676, %vm1708
    %vm1741 = vmand %vm1677, %vm1709
    %vm1742 = vmand %vm1678, %vm1710
    %vm1743 = vmand %vm1679, %vm1711
    %vm1744 = vmand %vm1680, %vm1712
    %vm1745 = vmand %vm1681, %vm1713
    %vm1746 = vmand %vm1682, %vm1714
    %vm1747 = vmand %vm1683, %vm1715
    %vm1748 = vmand %vm1684, %vm1716
    %vm1749 = vmand %vm1685, %vm1717
    %vm1750 = vmand %vm1686, %vm1718
    %vm1751 = vmand %vm1687, %vm1719
    %v1752 = vcvt.s32.f32 %v304
    %vm1753 = vcmp.eq.f32.partialorder %v1530, %v1752
    %vm1754 = vcmp.eq.f32.partialorder %v1533, %v1752
    %vm1755 = vcmp.eq.f32.partialorder %v1538, %v1752
    %vm1756 = vcmp.eq.f32.partialorder %v1541, %v1752
    %vm1757 = vcmp.eq.f32.partialorder %v1546, %v1752
    %vm1758 = vcmp.eq.f32.partialorder %v1549, %v1752
    %vm1759 = vcmp.eq.f32.partialorder %v1554, %v1752
    %vm1760 = vcmp.eq.f32.partialorder %v1557, %v1752
    %vm1761 = vcmp.eq.f32.partialorder %v1562, %v1752
    %vm1762 = vcmp.eq.f32.partialorder %v1565, %v1752
    %vm1763 = vcmp.eq.f32.partialorder %v1570, %v1752
    %vm1764 = vcmp.eq.f32.partialorder %v1573, %v1752
    %vm1765 = vcmp.eq.f32.partialorder %v1578, %v1752
    %vm1766 = vcmp.eq.f32.partialorder %v1581, %v1752
    %vm1767 = vcmp.eq.f32.partialorder %v1586, %v1752
    %vm1768 = vcmp.eq.f32.partialorder %v1589, %v1752
    %vm1769 = vcmp.eq.f32.partialorder %v1594, %v1752
    %vm1770 = vcmp.eq.f32.partialorder %v1597, %v1752
    %vm1771 = vcmp.eq.f32.partialorder %v1602, %v1752
    %vm1772 = vcmp.eq.f32.partialorder %v1605, %v1752
    %vm1773 = vcmp.eq.f32.partialorder %v1610, %v1752
    %vm1774 = vcmp.eq.f32.partialorder %v1613, %v1752
    %vm1775 = vcmp.eq.f32.partialorder %v1618, %v1752
    %vm1776 = vcmp.eq.f32.partialorder %v1621, %v1752
    %vm1777 = vcmp.eq.f32.partialorder %v1626, %v1752
    %vm1778 = vcmp.eq.f32.partialorder %v1629, %v1752
    %vm1779 = vcmp.eq.f32.partialorder %v1634, %v1752
    %vm1780 = vcmp.eq.f32.partialorder %v1637, %v1752
    %vm1781 = vcmp.eq.f32.partialorder %v1642, %v1752
    %vm1782 = vcmp.eq.f32.partialorder %v1645, %v1752
    %vm1783 = vcmp.eq.f32.partialorder %v1650, %v1752
    %vm1784 = vcmp.eq.f32.partialorder %v1653, %v1752
    %vm1785 = vmand %vm1720, %vm1753
    %vm1786 = vmand %vm1721, %vm1754
    %vm1787 = vmand %vm1722, %vm1755
    %vm1788 = vmand %vm1723, %vm1756
    %vm1789 = vmand %vm1724, %vm1757
    %vm1790 = vmand %vm1725, %vm1758
    %vm1791 = vmand %vm1726, %vm1759
    %vm1792 = vmand %vm1727, %vm1760
    %vm1793 = vmand %vm1728, %vm1761
    %vm1794 = vmand %vm1729, %vm1762
    %vm1795 = vmand %vm1730, %vm1763
    %vm1796 = vmand %vm1731, %vm1764
    %vm1797 = vmand %vm1732, %vm1765
    %vm1798 = vmand %vm1733, %vm1766
    %vm1799 = vmand %vm1734, %vm1767
    %vm1800 = vmand %vm1735, %vm1768
    %vm1801 = vmand %vm1736, %vm1769
    %vm1802 = vmand %vm1737, %vm1770
    %vm1803 = vmand %vm1738, %vm1771
    %vm1804 = vmand %vm1739, %vm1772
    %vm1805 = vmand %vm1740, %vm1773
    %vm1806 = vmand %vm1741, %vm1774
    %vm1807 = vmand %vm1742, %vm1775
    %vm1808 = vmand %vm1743, %vm1776
    %vm1809 = vmand %vm1744, %vm1777
    %vm1810 = vmand %vm1745, %vm1778
    %vm1811 = vmand %vm1746, %vm1779
    %vm1812 = vmand %vm1747, %vm1780
    %vm1813 = vmand %vm1748, %vm1781
    %vm1814 = vmand %vm1749, %vm1782
    %vm1815 = vmand %vm1750, %vm1783
    %vm1816 = vmand %vm1751, %vm1784
    %v1817 = vcvt.s32.f32 %v307
    %v1818 = vcvt.s32.f32 %v308
    %v1819 = vcvt.s32.f32 %v309
    %v1820 = vcvt.s32.f32 %v310
    %v1821 = vcvt.s32.f32 %v311
    %v1822 = vcvt.s32.f32 %v312
    %v1823 = vcvt.s32.f32 %v313
    %v1824 = vcvt.s32.f32 %v314
    %v1825 = vcvt.s32.f32 %v315
    %v1826 = vcvt.s32.f32 %v316
    %v1827 = vcvt.s32.f32 %v317
    %v1828 = vcvt.s32.f32 %v318
    %v1829 = vcvt.s32.f32 %v319
    %v1830 = vcvt.s32.f32 %v320
    %v1831 = vcvt.s32.f32 %v321
    %v1832 = vcvt.s32.f32 %v322
    %v1833 = vcvt.s32.f32 %v323
    %v1834 = vcvt.s32.f32 %v324
    %v1835 = vcvt.s32.f32 %v325
    %v1836 = vcvt.s32.f32 %v326
    %v1837 = vcvt.s32.f32 %v327
    %v1838 = vcvt.s32.f32 %v328
    %v1839 = vcvt.s32.f32 %v329
    %v1840 = vcvt.s32.f32 %v330
    %v1841 = vcvt.s32.f32 %v331
    %v1842 = vcvt.s32.f32 %v332
    %v1843 = vcvt.s32.f32 %v333
    %v1844 = vcvt.s32.f32 %v334
    %v1845 = vcvt.s32.f32 %v335
    %v1846 = vcvt.s32.f32 %v336
    %v1847 = vcvt.s32.f32 %v337
    %v1848 = vcvt.s32.f32 %v338
    %v1849 = vsel %vm1785, %v1817, -1.0
    %v1850 = vsel %vm1786, %v1818, -1.0
    %v1851 = vsel %vm1787, %v1819, -1.0
    %v1852 = vsel %vm1788, %v1820, -1.0
    %v1853 = vsel %vm1789, %v1821, -1.0
    %v1854 = vsel %vm1790, %v1822, -1.0
    %v1855 = vsel %vm1791, %v1823, -1.0
    %v1856 = vsel %vm1792, %v1824, -1.0
    %v1857 = vsel %vm1793, %v1825, -1.0
    %v1858 = vsel %vm1794, %v1826, -1.0
    %v1859 = vsel %vm1795, %v1827, -1.0
    %v1860 = vsel %vm1796, %v1828, -1.0
    %v1861 = vsel %vm1797, %v1829, -1.0
    %v1862 = vsel %vm1798, %v1830, -1.0
    %v1863 = vsel %vm1799, %v1831, -1.0
    %v1864 = vsel %vm1800, %v1832, -1.0
    %v1865 = vsel %vm1801, %v1833, -1.0
    %v1866 = vsel %vm1802, %v1834, -1.0
    %v1867 = vsel %vm1803, %v1835, -1.0
    %v1868 = vsel %vm1804, %v1836, -1.0
    %v1869 = vsel %vm1805, %v1837, -1.0
    %v1870 = vsel %vm1806, %v1838, -1.0
    %v1871 = vsel %vm1807, %v1839, -1.0
    %v1872 = vsel %vm1808, %v1840, -1.0
    %v1873 = vsel %vm1809, %v1841, -1.0
    %v1874 = vsel %vm1810, %v1842, -1.0
    %v1875 = vsel %vm1811, %v1843, -1.0
    %v1876 = vsel %vm1812, %v1844, -1.0
    %v1877 = vsel %vm1813, %v1845, -1.0
    %v1878 = vsel %vm1814, %v1846, -1.0
    %v1879 = vsel %vm1815, %v1847, -1.0
    %v1880 = vsel %vm1816, %v1848, -1.0
    %v1881 = vmax.f32 %v1849, %v1853
    %v1882 = vmax.f32 %v1850, %v1854
    %v1883 = vmax.f32 %v1851, %v1855
    %v1884 = vmax.f32 %v1852, %v1856
    %v1885 = vmax.f32 %v1881, %v1857
    %v1886 = vmax.f32 %v1882, %v1858
    %v1887 = vmax.f32 %v1883, %v1859
    %v1888 = vmax.f32 %v1884, %v1860
    %v1889 = vmax.f32 %v1885, %v1861
    %v1890 = vmax.f32 %v1886, %v1862
    %v1891 = vmax.f32 %v1887, %v1863
    %v1892 = vmax.f32 %v1888, %v1864
    %v1893 = vmax.f32 %v1889, %v1865
    %v1894 = vmax.f32 %v1890, %v1866
    %v1895 = vmax.f32 %v1891, %v1867
    %v1896 = vmax.f32 %v1892, %v1868
    %v1897 = vmax.f32 %v1893, %v1869
    %v1898 = vmax.f32 %v1894, %v1870
    %v1899 = vmax.f32 %v1895, %v1871
    %v1900 = vmax.f32 %v1896, %v1872
    %v1901 = vmax.f32 %v1897, %v1873
    %v1902 = vmax.f32 %v1898, %v1874
    %v1903 = vmax.f32 %v1899, %v1875
    %v1904 = vmax.f32 %v1900, %v1876
    %v1905 = vmax.f32 %v1901, %v1877
    %v1906 = vmax.f32 %v1902, %v1878
    %v1907 = vmax.f32 %v1903, %v1879
    %v1908 = vmax.f32 %v1904, %v1880
    %v1909 = vmax.f32 %v1905, %v1906
    %v1910 = vmax.f32 %v1907, %v1908
    %v1911 = vmax.f32 %v1909, %v1910
    %v1912 = vrot.slane %v1911, 4
    %v1913 = vmax.f32 %v1911, %v1912
    %v1914 = vrot.slane %v1913, 2
    %v1915 = vmax.f32 %v1913, %v1914
    %v1916 = vrot.slane %v1915, 1
    %v1917 = vmax.f32 %v1915, %v1916
    %v1918 = vcvt.f32.s32.to.zero.pseudo %v1917
    %1919 = vst [vmem:[#allocation10] sm:$0x1] %v1918
    // Predicated region
    $region42: #{tpu_custom_call.1} parent=1 // pred_check
      _
    $region43: #{tpu_custom_call.1} parent=1 // pred_check_branch
      %1921 = sbr.rel (0) target = $region45
    $region44: #{tpu_custom_call.1} parent=1 // pred_region
      %s1923 = ssub.s32 16, 16
      %1924 = vsyncadd [#allocation5], %s1923
      %s1926 = sshll.u32 [#allocation10], 4
      %s1927 = int_to_ptr.vmem [resolvable:$true] %s1926
      %1929 = dma.vmem_to_hbm [thread:$0]  %s1927, 16, %s8, [#allocation5]
    $region45: #{tpu_custom_call.1} parent=1 // pred_fallthru
      _
    // Predicated region
    $region46: #{tpu_custom_call.1} parent=1 // pred_check
      _
    $region47: #{tpu_custom_call.1} parent=1 // pred_check_branch
      %1931 = sbr.rel (0) target = $region49
    $region48: #{tpu_custom_call.1} parent=1 // pred_region
      %1932 = dma.done [#allocation5], 16
    $region49: #{tpu_custom_call.1} parent=1 // pred_fallthru
      _
    %1933 = vsyncpa [#allocation5], 1
    %1934 = vsyncpa [#allocation6], 1
    %1935 = vsyncpa [#allocation8], 1

</llo_original>
